<compile_context>
chip_gen: v5e
topology: v5e:2x2
jax: 0.10.0
libtpu: 0.0.40
codegen_flags: <defaults>
</compile_context>

<pallas_src>
import functools

import jax
import jax.numpy as jnp
from jax import lax
from jax.experimental import pallas as pl
from jax.experimental.pallas import tpu as pltpu

_OUT_LANES = 128  # lane-dense output slab width (column 0 carries the result)


def _round_up(a: int, m: int) -> int:
    return (a + m - 1) // m * m


def baseline_kernel(x_ref, table_ref, w_ref, b_ref, out_ref, acc_ref):
    """One (batch-tile, vocab-tile) grid step.

    x_ref:     (B_TILE, S)    int32 token ids (batch-major, resident per batch tile)
    table_ref: (V_TILE, E)    f32 embedding rows of this vocab tile (streamed)
    w_ref:     (1, E)         f32 fc weight
    b_ref:     (1, 1)         f32 fc bias (SMEM)
    out_ref:   (B_TILE, 128)  f32 lane-dense output slab (column 0 = result)
    acc_ref:   (B_TILE, 1)    f32 running sum of gathered logits over vocab tiles
    """
    kv = pl.program_id(1)
    b_tile, seq = x_ref.shape
    v_tile = table_ref.shape[0]

    @pl.when(kv == 0)
    def _init():
        acc_ref[...] = jnp.zeros_like(acc_ref)

    # Linear folded into the embedding table: logits[v] = <table[v, :], w>.
    # VPU multiply + lane reduce; keeps the MXU out of this memory-bound loop.
    logits_row = jnp.sum(table_ref[...] * w_ref[...], axis=-1).reshape(1, v_tile)

    # counts[b, v] = #{s : x[b, s] == kv * V_TILE + v}  (tile-bounded one-hot),
    # built from S static 2-D integer compares -- no (B, S, V_TILE) intermediate.
    ids = x_ref[...] - kv * v_tile                         # (B_TILE, S) local ids
    v_iota = lax.broadcasted_iota(jnp.int32, (b_tile, v_tile), 1)
    counts = jnp.zeros((b_tile, v_tile), jnp.int32)
    for s in range(seq):                                   # S is static & small
        counts = counts + (v_iota == ids[:, s:s + 1]).astype(jnp.int32)

    # Per-batch partial sum of gathered logits for this vocab tile (VPU + XLU).
    acc_ref[...] += jnp.sum(counts.astype(jnp.float32) * logits_row,
                            axis=-1, keepdims=True)

    @pl.when(kv == pl.num_programs(1) - 1)
    def _finalize():
        res = acc_ref[...] * (1.0 / seq) + b_ref[0, 0]     # (B_TILE, 1)
        out_ref[...] = jnp.broadcast_to(res, out_ref.shape)   # unmasked lane-dense store


@functools.partial(jax.jit, static_argnames=("v_tile", "b_tile"))
def baseline_forward(x, table, w, b, *, v_tile=1024, b_tile=128):
    """x: (S, B) int token ids; table: (V, E) f32; w: (1, E) f32; b: (1, 1) f32.

    Returns (B,) f32, matching Baseline.forward.
    """
    S, B = x.shape
    V, E = table.shape

    # Batch-major ids so the batch axis maps to sublanes.
    x_bm = x.astype(jnp.int32).T                           # (B, S)

    # Effective tiles: whole (padded) batch when it is smaller than b_tile, so
    # the table is streamed exactly once for typical batch sizes (n_b == 1).
    b_t = _round_up(min(b_tile, _round_up(B, 8)), 8)
    v_t = _round_up(min(v_tile, _round_up(V, 8)), 8)
    B_pad = _round_up(B, b_t)
    V_pad = _round_up(V, v_t)

    if B_pad != B:
        x_bm = jnp.pad(x_bm, ((0, B_pad - B), (0, 0)))     # pad ids with 0 (rows sliced off)
    if V_pad != V:
        table = jnp.pad(table, ((0, V_pad - V), (0, 0)))   # zero rows, never matched

    n_b = B_pad // b_t
    n_v = V_pad // v_t

    cost = pl.CostEstimate(
        flops=int(n_b * 2 * V_pad * E          # logits (per batch tile; n_b==1 typical)
                  + B_pad * S * V_pad          # tile-bounded one-hot compares/adds
                  + 2 * B_pad * V_pad),        # counts * logits + lane reduce
        transcendentals=0,
        bytes_accessed=int(n_b * V_pad * E * 4       # table streamed n_b times
                           + B_pad * S * 4           # ids read once
                           + B_pad * _OUT_LANES * 4),
    )

    out = pl.pallas_call(
        baseline_kernel,
        out_shape=jax.ShapeDtypeStruct((B_pad, _OUT_LANES), jnp.float32),
        grid_spec=pltpu.PrefetchScalarGridSpec(
            num_scalar_prefetch=0,
            grid=(n_b, n_v),                                  # (batch tiles, vocab tiles)
            in_specs=[
                pl.BlockSpec((b_t, S), lambda i, k: (i, 0)),        # token ids
                pl.BlockSpec((v_t, E), lambda i, k: (k, 0)),        # streamed table tile
                pl.BlockSpec((1, E), lambda i, k: (0, 0)),          # fc weight
                pl.BlockSpec(memory_space=pltpu.MemorySpace.SMEM),  # fc bias (scalar)
            ],
            out_specs=pl.BlockSpec((b_t, _OUT_LANES), lambda i, k: (i, 0)),
            scratch_shapes=[pltpu.VMEM((b_t, 1), jnp.float32)],
        ),
        compiler_params=pltpu.CompilerParams(
            # No hardcoded vmem_limit_bytes: the working set (2 x v_t x E x 4
            # table buffers + b_t x v_t x 4 counts + ids) is far below the
            # default scoped VMEM on v5e/v6e/v7x.
            dimension_semantics=("parallel", "arbitrary"),
        ),
        cost_estimate=cost,
    )(x_bm, table.astype(jnp.float32), w.astype(jnp.float32),
      b.reshape(1, 1).astype(jnp.float32))

    return out[:B, 0]


if __name__ == "__main__":
    # Small deterministic setup.  V=3000 with v_tile=1024 exercises the padded,
    # multi-tile vocab reduction; B=20 pads to one 24-row batch tile, i.e. a
    # single table pass.  A second config exercises n_b > 1 batch tiling.
    S, B = 16, 20          # seq_len, batch
    V, E = 3000, 64        # vocab size, embedding_dim

    key = jax.random.PRNGKey(0)
    k_tab, k_w, k_b, k_x = jax.random.split(key, 4)

    table = jax.random.normal(k_tab, (V, E), dtype=jnp.float32)        # vocab.vectors
    w = jax.random.normal(k_w, (1, E), dtype=jnp.float32) * 0.1        # nn.Linear weight
    b = jax.random.normal(k_b, (1, 1), dtype=jnp.float32) * 0.1        # nn.Linear bias
    x = jax.random.randint(k_x, (S, B), 0, V, dtype=jnp.int32)         # token ids

    # Pure-JAX reference (same math as the PyTorch forward).
    ref = (table[x].mean(axis=0) @ w.T + b[0, 0])[:, 0]

    out = baseline_forward(x, table, w, b)
    jax.block_until_ready(out)
    assert out.shape == (B,)
    assert jnp.allclose(out, ref, atol=1e-4, rtol=1e-4)

    # Multi-batch-tile / smaller vocab-tile config (exercises the 2-D grid path).
    out2 = baseline_forward(x, table, w, b, v_tile=512, b_tile=16)
    jax.block_until_ready(out2)
    assert jnp.allclose(out2, ref, atol=1e-4, rtol=1e-4)

    print("KERNEL_OK")
</pallas_src>

<mosaic_0001>
module attributes {stable_mosaic.version = 11 : i64} {
  func.func @baseline_kernel(%arg0: i32, %arg1: i32, %arg2: memref<24x16xi32, #tpu.memory_space<vmem>>, %arg3: memref<1024x64xf32, #tpu.memory_space<vmem>>, %arg4: memref<1x64xf32, #tpu.memory_space<vmem>>, %arg5: memref<1x1xf32, #tpu.memory_space<smem>>, %arg6: memref<24x128xf32, #tpu.memory_space<vmem>>, %arg7: memref<24x1xf32, #tpu.memory_space<vmem>>) attributes {dimension_semantics = [#tpu.dimension_semantics<parallel>, #tpu.dimension_semantics<arbitrary>], iteration_bounds = array<i64: 1, 3>, scalar_prefetch = 0 : i64, scratch_operands = 1 : i64, tpu.core_type = #tpu.core_type<tc>, window_params = [{transform_indices = @transform_0, window_bounds = array<i64: 24, 16>}, {transform_indices = @transform_1, window_bounds = array<i64: 1024, 64>}, {pipeline_mode = #tpu.pipeline_mode<synchronous>, transform_indices = @transform_2, window_bounds = array<i64: 1, 64>}, {transform_indices = @transform_3, window_bounds = array<i64: 1, 1>}, {transform_indices = @transform_4, window_bounds = array<i64: 24, 128>}]} {
    %c0_i32 = arith.constant 0 : i32
    %0 = arith.cmpi eq, %arg1, %c0_i32 : i32
    %1 = arith.extui %0 : i1 to i32
    %c0_i32_0 = arith.constant 0 : i32
    %2 = arith.cmpi ne, %1, %c0_i32_0 : i32
    scf.if %2 {
      %cst_13 = arith.constant 0.000000e+00 : f32
      %106 = vector.broadcast %cst_13 : f32 to vector<24x1xf32>
      %c0_14 = arith.constant 0 : index
      %c0_15 = arith.constant 0 : index
      %107 = vector.load %arg7[%c0_14, %c0_15] : memref<24x1xf32, #tpu.memory_space<vmem>>, vector<24x1xf32>
      tpu.vector_store %arg7[%c0_14, %c0_15], %106 {strides = array<i32>} : memref<24x1xf32, #tpu.memory_space<vmem>>, vector<24x1xf32>,
    } else {
    }
    %c0 = arith.constant 0 : index
    %c0_1 = arith.constant 0 : index
    %3 = vector.load %arg3[%c0, %c0_1] : memref<1024x64xf32, #tpu.memory_space<vmem>>, vector<1024x64xf32>
    %c0_2 = arith.constant 0 : index
    %c0_3 = arith.constant 0 : index
    %4 = vector.load %arg4[%c0_2, %c0_3] : memref<1x64xf32, #tpu.memory_space<vmem>>, vector<1x64xf32>
    %5 = vector.broadcast %4 : vector<1x64xf32> to vector<1024x64xf32>
    %6 = arith.mulf %3, %5 : vector<1024x64xf32>
    %cst = arith.constant dense<0.000000e+00> : vector<1024xf32>
    %7 = vector.multi_reduction <add>, %6, %cst [1] : vector<1024x64xf32> to vector<1024xf32>
    %8 = vector.shape_cast %7 : vector<1024xf32> to vector<1x1024xf32>
    %c0_4 = arith.constant 0 : index
    %c0_5 = arith.constant 0 : index
    %9 = vector.load %arg2[%c0_4, %c0_5] : memref<24x16xi32, #tpu.memory_space<vmem>>, vector<24x16xi32>
    %c1024_i32 = arith.constant 1024 : i32
    %10 = arith.muli %arg1, %c1024_i32 : i32
    %11 = vector.broadcast %10 : i32 to vector<24x16xi32>
    %12 = arith.subi %9, %11 : vector<24x16xi32>
    %13 = tpu.iota {dimensions = array<i32: 1>} : vector<24x1024xi32>
    %c0_i32_6 = arith.constant 0 : i32
    %14 = vector.broadcast %c0_i32_6 : i32 to vector<24x1024xi32>
    %15 = vector.extract_strided_slice %12 {offsets = [0, 0], sizes = [24, 1], strides = [1, 1]} : vector<24x16xi32> to vector<24x1xi32>
    %16 = vector.broadcast %15 : vector<24x1xi32> to vector<24x1024xi32>
    %17 = arith.cmpi eq, %13, %16 : vector<24x1024xi32>
    %18 = arith.extui %17 : vector<24x1024xi1> to vector<24x1024xi32>
    %19 = arith.addi %14, %18 : vector<24x1024xi32>
    %20 = vector.extract_strided_slice %12 {offsets = [0, 1], sizes = [24, 1], strides = [1, 1]} : vector<24x16xi32> to vector<24x1xi32>
    %21 = vector.broadcast %20 : vector<24x1xi32> to vector<24x1024xi32>
    %22 = arith.cmpi eq, %13, %21 : vector<24x1024xi32>
    %23 = arith.extui %22 : vector<24x1024xi1> to vector<24x1024xi32>
    %24 = arith.addi %19, %23 : vector<24x1024xi32>
    %25 = vector.extract_strided_slice %12 {offsets = [0, 2], sizes = [24, 1], strides = [1, 1]} : vector<24x16xi32> to vector<24x1xi32>
    %26 = vector.broadcast %25 : vector<24x1xi32> to vector<24x1024xi32>
    %27 = arith.cmpi eq, %13, %26 : vector<24x1024xi32>
    %28 = arith.extui %27 : vector<24x1024xi1> to vector<24x1024xi32>
    %29 = arith.addi %24, %28 : vector<24x1024xi32>
    %30 = vector.extract_strided_slice %12 {offsets = [0, 3], sizes = [24, 1], strides = [1, 1]} : vector<24x16xi32> to vector<24x1xi32>
    %31 = vector.broadcast %30 : vector<24x1xi32> to vector<24x1024xi32>
    %32 = arith.cmpi eq, %13, %31 : vector<24x1024xi32>
    %33 = arith.extui %32 : vector<24x1024xi1> to vector<24x1024xi32>
    %34 = arith.addi %29, %33 : vector<24x1024xi32>
    %35 = vector.extract_strided_slice %12 {offsets = [0, 4], sizes = [24, 1], strides = [1, 1]} : vector<24x16xi32> to vector<24x1xi32>
    %36 = vector.broadcast %35 : vector<24x1xi32> to vector<24x1024xi32>
    %37 = arith.cmpi eq, %13, %36 : vector<24x1024xi32>
    %38 = arith.extui %37 : vector<24x1024xi1> to vector<24x1024xi32>
    %39 = arith.addi %34, %38 : vector<24x1024xi32>
    %40 = vector.extract_strided_slice %12 {offsets = [0, 5], sizes = [24, 1], strides = [1, 1]} : vector<24x16xi32> to vector<24x1xi32>
    %41 = vector.broadcast %40 : vector<24x1xi32> to vector<24x1024xi32>
    %42 = arith.cmpi eq, %13, %41 : vector<24x1024xi32>
    %43 = arith.extui %42 : vector<24x1024xi1> to vector<24x1024xi32>
    %44 = arith.addi %39, %43 : vector<24x1024xi32>
    %45 = vector.extract_strided_slice %12 {offsets = [0, 6], sizes = [24, 1], strides = [1, 1]} : vector<24x16xi32> to vector<24x1xi32>
    %46 = vector.broadcast %45 : vector<24x1xi32> to vector<24x1024xi32>
    %47 = arith.cmpi eq, %13, %46 : vector<24x1024xi32>
    %48 = arith.extui %47 : vector<24x1024xi1> to vector<24x1024xi32>
    %49 = arith.addi %44, %48 : vector<24x1024xi32>
    %50 = vector.extract_strided_slice %12 {offsets = [0, 7], sizes = [24, 1], strides = [1, 1]} : vector<24x16xi32> to vector<24x1xi32>
    %51 = vector.broadcast %50 : vector<24x1xi32> to vector<24x1024xi32>
    %52 = arith.cmpi eq, %13, %51 : vector<24x1024xi32>
    %53 = arith.extui %52 : vector<24x1024xi1> to vector<24x1024xi32>
    %54 = arith.addi %49, %53 : vector<24x1024xi32>
    %55 = vector.extract_strided_slice %12 {offsets = [0, 8], sizes = [24, 1], strides = [1, 1]} : vector<24x16xi32> to vector<24x1xi32>
    %56 = vector.broadcast %55 : vector<24x1xi32> to vector<24x1024xi32>
    %57 = arith.cmpi eq, %13, %56 : vector<24x1024xi32>
    %58 = arith.extui %57 : vector<24x1024xi1> to vector<24x1024xi32>
    %59 = arith.addi %54, %58 : vector<24x1024xi32>
    %60 = vector.extract_strided_slice %12 {offsets = [0, 9], sizes = [24, 1], strides = [1, 1]} : vector<24x16xi32> to vector<24x1xi32>
    %61 = vector.broadcast %60 : vector<24x1xi32> to vector<24x1024xi32>
    %62 = arith.cmpi eq, %13, %61 : vector<24x1024xi32>
    %63 = arith.extui %62 : vector<24x1024xi1> to vector<24x1024xi32>
    %64 = arith.addi %59, %63 : vector<24x1024xi32>
    %65 = vector.extract_strided_slice %12 {offsets = [0, 10], sizes = [24, 1], strides = [1, 1]} : vector<24x16xi32> to vector<24x1xi32>
    %66 = vector.broadcast %65 : vector<24x1xi32> to vector<24x1024xi32>
    %67 = arith.cmpi eq, %13, %66 : vector<24x1024xi32>
    %68 = arith.extui %67 : vector<24x1024xi1> to vector<24x1024xi32>
    %69 = arith.addi %64, %68 : vector<24x1024xi32>
    %70 = vector.extract_strided_slice %12 {offsets = [0, 11], sizes = [24, 1], strides = [1, 1]} : vector<24x16xi32> to vector<24x1xi32>
    %71 = vector.broadcast %70 : vector<24x1xi32> to vector<24x1024xi32>
    %72 = arith.cmpi eq, %13, %71 : vector<24x1024xi32>
    %73 = arith.extui %72 : vector<24x1024xi1> to vector<24x1024xi32>
    %74 = arith.addi %69, %73 : vector<24x1024xi32>
    %75 = vector.extract_strided_slice %12 {offsets = [0, 12], sizes = [24, 1], strides = [1, 1]} : vector<24x16xi32> to vector<24x1xi32>
    %76 = vector.broadcast %75 : vector<24x1xi32> to vector<24x1024xi32>
    %77 = arith.cmpi eq, %13, %76 : vector<24x1024xi32>
    %78 = arith.extui %77 : vector<24x1024xi1> to vector<24x1024xi32>
    %79 = arith.addi %74, %78 : vector<24x1024xi32>
    %80 = vector.extract_strided_slice %12 {offsets = [0, 13], sizes = [24, 1], strides = [1, 1]} : vector<24x16xi32> to vector<24x1xi32>
    %81 = vector.broadcast %80 : vector<24x1xi32> to vector<24x1024xi32>
    %82 = arith.cmpi eq, %13, %81 : vector<24x1024xi32>
    %83 = arith.extui %82 : vector<24x1024xi1> to vector<24x1024xi32>
    %84 = arith.addi %79, %83 : vector<24x1024xi32>
    %85 = vector.extract_strided_slice %12 {offsets = [0, 14], sizes = [24, 1], strides = [1, 1]} : vector<24x16xi32> to vector<24x1xi32>
    %86 = vector.broadcast %85 : vector<24x1xi32> to vector<24x1024xi32>
    %87 = arith.cmpi eq, %13, %86 : vector<24x1024xi32>
    %88 = arith.extui %87 : vector<24x1024xi1> to vector<24x1024xi32>
    %89 = arith.addi %84, %88 : vector<24x1024xi32>
    %90 = vector.extract_strided_slice %12 {offsets = [0, 15], sizes = [24, 1], strides = [1, 1]} : vector<24x16xi32> to vector<24x1xi32>
    %91 = vector.broadcast %90 : vector<24x1xi32> to vector<24x1024xi32>
    %92 = arith.cmpi eq, %13, %91 : vector<24x1024xi32>
    %93 = arith.extui %92 : vector<24x1024xi1> to vector<24x1024xi32>
    %94 = arith.addi %89, %93 : vector<24x1024xi32>
    %c0_7 = arith.constant 0 : index
    %c0_8 = arith.constant 0 : index
    %95 = vector.load %arg7[%c0_7, %c0_8] : memref<24x1xf32, #tpu.memory_space<vmem>>, vector<24x1xf32>
    %96 = arith.sitofp %94 : vector<24x1024xi32> to vector<24x1024xf32>
    %97 = vector.broadcast %8 : vector<1x1024xf32> to vector<24x1024xf32>
    %98 = arith.mulf %96, %97 : vector<24x1024xf32>
    %cst_9 = arith.constant dense<0.000000e+00> : vector<24xf32>
    %99 = vector.multi_reduction <add>, %98, %cst_9 [1] : vector<24x1024xf32> to vector<24xf32>
    %100 = vector.shape_cast %99 : vector<24xf32> to vector<24x1xf32>
    %101 = arith.addf %95, %100 : vector<24x1xf32>
    %c0_10 = arith.constant 0 : index
    %c0_11 = arith.constant 0 : index
    %102 = vector.load %arg7[%c0_10, %c0_11] : memref<24x1xf32, #tpu.memory_space<vmem>>, vector<24x1xf32>
    tpu.vector_store %arg7[%c0_10, %c0_11], %101 {strides = array<i32>} : memref<24x1xf32, #tpu.memory_space<vmem>>, vector<24x1xf32>,
    %c2_i32 = arith.constant 2 : i32
    %103 = arith.cmpi eq, %arg1, %c2_i32 : i32
    %104 = arith.extui %103 : i1 to i32
    %c0_i32_12 = arith.constant 0 : i32
    %105 = arith.cmpi ne, %104, %c0_i32_12 : i32
    scf.if %105 {
      %c0_13 = arith.constant 0 : index
      %c0_14 = arith.constant 0 : index
      %106 = vector.load %arg7[%c0_13, %c0_14] : memref<24x1xf32, #tpu.memory_space<vmem>>, vector<24x1xf32>
      %cst_15 = arith.constant 6.250000e-02 : f32
      %107 = vector.broadcast %cst_15 : f32 to vector<24x1xf32>
      %108 = arith.mulf %106, %107 : vector<24x1xf32>
      %c0_16 = arith.constant 0 : index
      %c0_17 = arith.constant 0 : index
      %109 = memref.load %arg5[%c0_16, %c0_17] : memref<1x1xf32, #tpu.memory_space<smem>>
      %110 = vector.broadcast %109 : f32 to vector<24x1xf32>
      %111 = arith.addf %108, %110 : vector<24x1xf32>
      %112 = vector.shape_cast %111 : vector<24x1xf32> to vector<24x1xf32>
      %113 = vector.broadcast %112 : vector<24x1xf32> to vector<24x128xf32>
      %c0_18 = arith.constant 0 : index
      %c0_19 = arith.constant 0 : index
      %114 = vector.load %arg6[%c0_18, %c0_19] : memref<24x128xf32, #tpu.memory_space<vmem>>, vector<24x128xf32>
      tpu.vector_store %arg6[%c0_18, %c0_19], %113 {strides = array<i32>} : memref<24x128xf32, #tpu.memory_space<vmem>>, vector<24x128xf32>,
    } else {
    }
    return
  }
  func.func @transform_0(%arg0: i32, %arg1: i32) -> (i32, i32) {
    %c0_i32 = arith.constant 0 : i32
    %c0_i32_0 = arith.constant 0 : i32
    return %arg0, %c0_i32 : i32, i32
  }
  func.func @transform_1(%arg0: i32, %arg1: i32) -> (i32, i32) {
    %c0_i32 = arith.constant 0 : i32
    %c0_i32_0 = arith.constant 0 : i32
    return %arg1, %c0_i32 : i32, i32
  }
  func.func @transform_2(%arg0: i32, %arg1: i32) -> (i32, i32) {
    %c0_i32 = arith.constant 0 : i32
    %c0_i32_0 = arith.constant 0 : i32
    %c0_i32_1 = arith.constant 0 : i32
    return %c0_i32, %c0_i32_0 : i32, i32
  }
  func.func @transform_3(%arg0: i32, %arg1: i32) -> (i32, i32) {
    %c0_i32 = arith.constant 0 : i32
    %c0_i32_0 = arith.constant 0 : i32
    %c0_i32_1 = arith.constant 0 : i32
    return %c0_i32, %c0_i32_0 : i32, i32
  }
  func.func @transform_4(%arg0: i32, %arg1: i32) -> (i32, i32) {
    %c0_i32 = arith.constant 0 : i32
    %c0_i32_0 = arith.constant 0 : i32
    return %arg0, %c0_i32 : i32, i32
  }
}

</mosaic_0001>

<llo_original>
// kernel: baseline_forward.1
$region0: #{baseline_forward.1}
  #allocation0 [shape = 'u32[]', space=smem, size = 0x4, offset = 0x4, fixed_abs, tag = 'smem constant byte address 0x4 - core index']
  #allocation1 [shape = 'u32[72,128]{1,0:T(1,128)}', space=vmem, size = 0x9000, scoped, tag = 'internal scratch']
  #allocation2 [shape = 'f32[24,1]{1,0:T(8,128)}', space=vmem, size = 0x3000, scoped, tag = 'scratch operand']
  #allocation3 [shape = 'f32[1,1]{1,0:T(1,128)S(6)}', space=smem, size = 0x200, scoped, tag = 'scoped memory for baseline_forward.1']
  %s0 = inlined_call_operand.vmem [shape: s32[24,16], index: 0, kind: input, shape index: {}]
  %s1 = inlined_call_operand.vmem [shape: f32[3072,64], index: 1, kind: input, shape index: {}]
  %s2 = inlined_call_operand.vmem [shape: f32[1,64], index: 2, kind: input, shape index: {}]
  %s3 = inlined_call_operand.<no memory space> [shape: f32[1,1], index: 3, kind: input, shape index: {}]
  %s4 = inlined_call_operand.vmem [shape: f32[24,128], index: 4, kind: output, shape index: {}]
  %s5 = sld [smem:[#allocation0]]
  $region57: #{baseline_forward.1} parent=0
    _
  %s7 = ssub.s32 1, %s5
  %s8 = scalar_select 0, %s7, %s5
  %9 = sst [smem:[#allocation3]] %s3
  loop: start=0, step=1, limit=5
  $region2: #{baseline_forward.1} parent=0 // loop_pre_header
    _
  $region3: #{baseline_forward.1} parent=0 // loop_header
    %s11 = sphi 0, %s15
    %p12 = scmp.ge.s32.totalorder %s11, 5
    %s18 = sphi 0, %s30
    %s19 = sphi 0, %s26
    %s20 = sphi 0, %s18
    %s21 = sphi 0, %s19
    %s22 = sphi 0, %s20
    %s23 = sphi 0, %s21
    %s33 = sphi 0, %s35
    %s36 = sphi 0, %s33
    %s37 = sphi 0, %s36
    %s53 = sphi 0, %s37
    %s59 = sphi 0, %s61
    %s62 = sphi 0, %s59
    %s63 = sphi 0, %s62
    %s79 = sphi 0, %s63
    %s83 = sphi 0, %s83
    %s85 = sphi 0, %s83
    %s86 = sphi 0, %s85
    %s100 = sphi 0, %s86
    %s104 = sphi 0, %s104
    %s106 = sphi 0, %s104
    %s107 = sphi 0, %s106
    %s121 = sphi 0, %s107
    %s127 = sphi 0, %s129
    %s130 = sphi 0, %s127
    %s131 = sphi 0, %s130
    %s147 = sphi 0, %s131
  $region4: #{baseline_forward.1} parent=0 // loop_header_branch
    %14 = sbr.rel (%p12) target = $region8
  $region5: #{baseline_forward.1} parent=0 // loop_body
    %s16 = ssub.s32 %s11, 1
    %s17 = ssub.s32 %s11, 2
    %s24 = sadd.s32 1, %s19
    %p25 = scmp.ge.s32.totalorder %s24, 3
    %s26 = scalar_select %p25, 0, %s24
    %s27 = sadd.s32 1, %s18
    %s28 = scalar_select %p25, %s27, %s18
    %p29 = scmp.ge.s32.totalorder %s28, 1
    %s30 = scalar_select %p29, 0, %s28
    %s31 = ssub.s32 %s18, %s30
    %p32 = scmp.eq.s32.totalorder %s31, 0
    %s34 = sadd.s32 %s33, 1
    %s35 = scalar_select %p32, %s33, %s34
    %p38 = pneg %p32
    %p39 = scmp.eq.s32.totalorder %s11, 2
    %p40 = por %p38, %p39
    %p41 = scmp.ne.s32.totalorder %s33, %s36
    %p42 = scmp.eq.s32.totalorder %s11, 0
    %p43 = por %p41, %p42
    %p44 = scmp.ne.s32.totalorder %s33, %s36
    %p45 = scmp.eq.s32.totalorder %s16, 2
    %p46 = por %p44, %p45
    %p47 = scmp.ne.s32.totalorder %s36, %s37
    %p48 = scmp.eq.s32.totalorder %s16, 0
    %p49 = por %p47, %p48
    %p50 = scmp.ne.s32.totalorder %s36, %s37
    %p51 = scmp.eq.s32.totalorder %s17, 2
    %p52 = por %p50, %p51
    %p54 = scmp.ne.s32.totalorder %s37, %s53
    %p55 = scmp.eq.s32.totalorder %s17, 0
    %p56 = por %p54, %p55
    %s57 = ssub.s32 %s19, %s26
    %p58 = scmp.eq.s32.totalorder %s57, 0
    %s60 = sadd.s32 %s59, 1
    %s61 = scalar_select %p58, %s59, %s60
    %p64 = pneg %p58
    %p65 = scmp.eq.s32.totalorder %s11, 2
    %p66 = por %p64, %p65
    %p67 = scmp.ne.s32.totalorder %s59, %s62
    %p68 = scmp.eq.s32.totalorder %s11, 0
    %p69 = por %p67, %p68
    %p70 = scmp.ne.s32.totalorder %s59, %s62
    %p71 = scmp.eq.s32.totalorder %s16, 2
    %p72 = por %p70, %p71
    %p73 = scmp.ne.s32.totalorder %s62, %s63
    %p74 = scmp.eq.s32.totalorder %s16, 0
    %p75 = por %p73, %p74
    %p76 = scmp.ne.s32.totalorder %s62, %s63
    %p77 = scmp.eq.s32.totalorder %s17, 2
    %p78 = por %p76, %p77
    %p80 = scmp.ne.s32.totalorder %s63, %s79
    %p81 = scmp.eq.s32.totalorder %s17, 0
    %p82 = por %p80, %p81
    %s84 = sadd.s32 %s83, 1
    %p87 = scmp.eq.s32.totalorder %s11, 2
    %p88 = scmp.ne.s32.totalorder %s83, %s85
    %p89 = scmp.eq.s32.totalorder %s11, 0
    %p90 = por %p88, %p89
    %p91 = scmp.ne.s32.totalorder %s83, %s85
    %p92 = scmp.eq.s32.totalorder %s16, 2
    %p93 = por %p91, %p92
    %p94 = scmp.ne.s32.totalorder %s85, %s86
    %p95 = scmp.eq.s32.totalorder %s16, 0
    %p96 = por %p94, %p95
    %p97 = scmp.ne.s32.totalorder %s85, %s86
    %p98 = scmp.eq.s32.totalorder %s17, 2
    %p99 = por %p97, %p98
    %p101 = scmp.ne.s32.totalorder %s86, %s100
    %p102 = scmp.eq.s32.totalorder %s17, 0
    %p103 = por %p101, %p102
    %s105 = sadd.s32 %s104, 1
    %p108 = scmp.eq.s32.totalorder %s11, 2
    %p109 = scmp.ne.s32.totalorder %s104, %s106
    %p110 = scmp.eq.s32.totalorder %s11, 0
    %p111 = por %p109, %p110
    %p112 = scmp.ne.s32.totalorder %s104, %s106
    %p113 = scmp.eq.s32.totalorder %s16, 2
    %p114 = por %p112, %p113
    %p115 = scmp.ne.s32.totalorder %s106, %s107
    %p116 = scmp.eq.s32.totalorder %s16, 0
    %p117 = por %p115, %p116
    %p118 = scmp.ne.s32.totalorder %s106, %s107
    %p119 = scmp.eq.s32.totalorder %s17, 2
    %p120 = por %p118, %p119
    %p122 = scmp.ne.s32.totalorder %s107, %s121
    %p123 = scmp.eq.s32.totalorder %s17, 0
    %p124 = por %p122, %p123
    %s125 = ssub.s32 %s18, %s30
    %p126 = scmp.eq.s32.totalorder %s125, 0
    %s128 = sadd.s32 %s127, 1
    %s129 = scalar_select %p126, %s127, %s128
    %p132 = pneg %p126
    %p133 = scmp.eq.s32.totalorder %s11, 2
    %p134 = por %p132, %p133
    %p135 = scmp.ne.s32.totalorder %s127, %s130
    %p136 = scmp.eq.s32.totalorder %s11, 0
    %p137 = por %p135, %p136
    %p138 = scmp.ne.s32.totalorder %s127, %s130
    %p139 = scmp.eq.s32.totalorder %s16, 2
    %p140 = por %p138, %p139
    %p141 = scmp.ne.s32.totalorder %s130, %s131
    %p142 = scmp.eq.s32.totalorder %s16, 0
    %p143 = por %p141, %p142
    %p144 = scmp.ne.s32.totalorder %s130, %s131
    %p145 = scmp.eq.s32.totalorder %s17, 2
    %p146 = por %p144, %p145
    %p148 = scmp.ne.s32.totalorder %s131, %s147
    %p149 = scmp.eq.s32.totalorder %s17, 0
    %p150 = por %p148, %p149
    %p151 = scmp.le.s32.totalorder 1, %s11
    %p152 = scmp.lt.s32.totalorder %s11, 4
    %p153 = pnand %p151, %p152
    %p154 = pneg %p153
    // Predicated region
    $region9: #{baseline_forward.1} parent=5 // pred_check
      _
    $region10: #{baseline_forward.1} parent=5 // pred_check_branch
      %156 = sbr.rel (%p153) target = $region12
    $region11: #{baseline_forward.1} parent=5 // pred_region
      %s157 = ssub.s32 %s11, 1
      // Predicated region
      $region13: #{baseline_forward.1} parent=11 // pred_check
        %p158 = pneg %p49
      $region14: #{baseline_forward.1} parent=11 // pred_check_branch
        %160 = sbr.rel (%p158) target = $region16
      $region15: #{baseline_forward.1} parent=11 // pred_region
        %s161 = smul.u32 3, %s20
        %p162 = scmp.lt.s32.totalorder %s161, 2
        %s163 = scalar_select %p162, %s161, 2
        %s164 = smul.addr %s163, 8
        %s165 = scalar_lea.vmem %s0, %s164
        %s166 = smul.u32 3, %s20
      $region16: #{baseline_forward.1} parent=11 // pred_fallthru
        _
      // Predicated region
      $region17: #{baseline_forward.1} parent=11 // pred_check
        %p167 = pneg %p96
      $region18: #{baseline_forward.1} parent=11 // pred_check_branch
        %169 = sbr.rel (%p167) target = $region20
      $region19: #{baseline_forward.1} parent=11 // pred_region
        _
      $region20: #{baseline_forward.1} parent=11 // pred_fallthru
        _
      // Predicated region
      $region21: #{baseline_forward.1} parent=11 // pred_check
        %p170 = pneg %p117
      $region22: #{baseline_forward.1} parent=11 // pred_check_branch
        %172 = sbr.rel (%p170) target = $region24
      $region23: #{baseline_forward.1} parent=11 // pred_region
        _
      $region24: #{baseline_forward.1} parent=11 // pred_fallthru
        _
    $region12: #{baseline_forward.1} parent=5 // pred_fallthru
      _
    %p173 = scmp.lt.s32.totalorder %s11, 3
    // Predicated region
    $region25: #{baseline_forward.1} parent=5 // pred_check
      %p174 = pneg %p173
    $region26: #{baseline_forward.1} parent=5 // pred_check_branch
      %176 = sbr.rel (%p174) target = $region28
    $region27: #{baseline_forward.1} parent=5 // pred_region
      // Predicated region
      $region29: #{baseline_forward.1} parent=27 // pred_check
        %p177 = pneg %p69
      $region30: #{baseline_forward.1} parent=27 // pred_check_branch
        %179 = sbr.rel (%p177) target = $region32
      $region31: #{baseline_forward.1} parent=27 // pred_region
        %s180 = smul.u32 128, %s19
        %p181 = scmp.lt.s32.totalorder %s180, 383
        %s182 = scalar_select %p181, %s180, 383
        %s183 = smul.addr %s182, 8
        %s184 = scalar_lea.vmem %s1, %s183
        %s185 = smul.u32 128, %s19
      $region32: #{baseline_forward.1} parent=27 // pred_fallthru
        _
    $region28: #{baseline_forward.1} parent=5 // pred_fallthru
      _
    %p186 = scmp.le.s32.totalorder 1, %s11
    %p187 = scmp.lt.s32.totalorder %s11, 4
    %p188 = pnand %p186, %p187
    %p189 = pneg %p188
    // Predicated region
    $region33: #{baseline_forward.1} parent=5 // pred_check
      _
    $region34: #{baseline_forward.1} parent=5 // pred_check_branch
      %191 = sbr.rel (%p188) target = $region36
    $region35: #{baseline_forward.1} parent=5 // pred_region
      %s192 = ssub.s32 %s11, 1
      %s193 = smul.u32 3, %s20
      %p194 = scmp.lt.s32.totalorder %s193, 2
      %s195 = scalar_select %p194, %s193, 2
      %s196 = smul.addr %s195, 8
      %s197 = scalar_lea.vmem %s0, %s196
      %p198 = pneg %p49
      %p199 = pneg %p46
      %s200 = smul.u32 128, %s21
      %p201 = scmp.lt.s32.totalorder %s200, 383
      %s202 = scalar_select %p201, %s200, 383
      %s203 = smul.addr %s202, 8
      %s204 = scalar_lea.vmem %s1, %s203
      %p205 = pneg %p75
      %p206 = pneg %p72
      %p207 = pneg %p96
      %p208 = pneg %p93
      %p209 = pneg %p117
      %p210 = pneg %p114
      %p211 = pneg %p143
      %p212 = pneg %p140
      %s213 = smul.u32 3, %s20
      %p214 = scmp.lt.s32.totalorder %s213, 2
      %s215 = scalar_select %p214, %s213, 2
      %s216 = smul.addr %s215, 8
      %s217 = scalar_lea.vmem %s4, %s216
      %s218 = smul.u32 3, %s20
      %p219 = scmp.lt.s32.totalorder %s218, 2
      %s220 = scalar_select %p219, %s218, 2
      %s221 = smul.addr %s220, 8
      %s222 = scalar_lea.vmem %s0, %s221
      %s223 = smul.u32 3, %s20
      %s224 = smul.u32 128, %s21
      %p225 = scmp.lt.s32.totalorder %s224, 383
      %s226 = scalar_select %p225, %s224, 383
      %s227 = smul.addr %s226, 8
      %s228 = scalar_lea.vmem %s1, %s227
      %s229 = smul.u32 128, %s21
      %s230 = smul.u32 3, %s20
      %p231 = scmp.lt.s32.totalorder %s230, 2
      %s232 = scalar_select %p231, %s230, 2
      %s233 = smul.addr %s232, 8
      %s234 = scalar_lea.vmem %s4, %s233
      %s235 = smul.u32 3, %s20
      %p236 = scmp.eq.s32.totalorder %s21, 0
      // Predicated region
      $region37: #{baseline_forward.1} parent=35 // pred_check
        %p237 = pneg %p236
      $region38: #{baseline_forward.1} parent=35 // pred_check_branch
        %239 = sbr.rel (%p237) target = $region40
      $region39: #{baseline_forward.1} parent=35 // pred_region
        %vm240 = vcmask 7168
        %241 = vst.msk [vmem:[#allocation2] sm:$0xff] %vm240, 0.0
        %242 = vst.msk [vmem:[#allocation2 + $0x8] sm:$0xff] %vm240, 0.0
        %243 = vst.msk [vmem:[#allocation2 + $0x10] sm:$0xff] %vm240, 0.0
      $region40: #{baseline_forward.1} parent=35 // pred_fallthru
        _
      %v244 = vld [vmem:[%s228] sm:$0xff]
      %v245 = vld [vmem:[%s228 + $0x8] sm:$0xff]
      %v246 = vld [vmem:[%s228 + $0x10] sm:$0xff]
      %v247 = vld [vmem:[%s228 + $0x18] sm:$0xff]
      %v248 = vld [vmem:[%s228 + $0x20] sm:$0xff]
      %v249 = vld [vmem:[%s228 + $0x28] sm:$0xff]
      %v250 = vld [vmem:[%s228 + $0x30] sm:$0xff]
      %v251 = vld [vmem:[%s228 + $0x38] sm:$0xff]
      %v252 = vld [vmem:[%s228 + $0x40] sm:$0xff]
      %v253 = vld [vmem:[%s228 + $0x48] sm:$0xff]
      %v254 = vld [vmem:[%s228 + $0x50] sm:$0xff]
      %v255 = vld [vmem:[%s228 + $0x58] sm:$0xff]
      %v256 = vld [vmem:[%s228 + $0x60] sm:$0xff]
      %v257 = vld [vmem:[%s228 + $0x68] sm:$0xff]
      %v258 = vld [vmem:[%s228 + $0x70] sm:$0xff]
      %v259 = vld [vmem:[%s228 + $0x78] sm:$0xff]
      %v260 = vld [vmem:[%s228 + $0x80] sm:$0xff]
      %v261 = vld [vmem:[%s228 + $0x88] sm:$0xff]
      %v262 = vld [vmem:[%s228 + $0x90] sm:$0xff]
      %v263 = vld [vmem:[%s228 + $0x98] sm:$0xff]
      %v264 = vld [vmem:[%s228 + $0xa0] sm:$0xff]
      %v265 = vld [vmem:[%s228 + $0xa8] sm:$0xff]
      %v266 = vld [vmem:[%s228 + $0xb0] sm:$0xff]
      %v267 = vld [vmem:[%s228 + $0xb8] sm:$0xff]
      %v268 = vld [vmem:[%s228 + $0xc0] sm:$0xff]
      %v269 = vld [vmem:[%s228 + $0xc8] sm:$0xff]
      %v270 = vld [vmem:[%s228 + $0xd0] sm:$0xff]
      %v271 = vld [vmem:[%s228 + $0xd8] sm:$0xff]
      %v272 = vld [vmem:[%s228 + $0xe0] sm:$0xff]
      %v273 = vld [vmem:[%s228 + $0xe8] sm:$0xff]
      %v274 = vld [vmem:[%s228 + $0xf0] sm:$0xff]
      %v275 = vld [vmem:[%s228 + $0xf8] sm:$0xff]
      %v276 = vld [vmem:[%s228 + $0x100] sm:$0xff]
      %v277 = vld [vmem:[%s228 + $0x108] sm:$0xff]
      %v278 = vld [vmem:[%s228 + $0x110] sm:$0xff]
      %v279 = vld [vmem:[%s228 + $0x118] sm:$0xff]
      %v280 = vld [vmem:[%s228 + $0x120] sm:$0xff]
      %v281 = vld [vmem:[%s228 + $0x128] sm:$0xff]
      %v282 = vld [vmem:[%s228 + $0x130] sm:$0xff]
      %v283 = vld [vmem:[%s228 + $0x138] sm:$0xff]
      %v284 = vld [vmem:[%s228 + $0x140] sm:$0xff]
      %v285 = vld [vmem:[%s228 + $0x148] sm:$0xff]
      %v286 = vld [vmem:[%s228 + $0x150] sm:$0xff]
      %v287 = vld [vmem:[%s228 + $0x158] sm:$0xff]
      %v288 = vld [vmem:[%s228 + $0x160] sm:$0xff]
      %v289 = vld [vmem:[%s228 + $0x168] sm:$0xff]
      %v290 = vld [vmem:[%s228 + $0x170] sm:$0xff]
      %v291 = vld [vmem:[%s228 + $0x178] sm:$0xff]
      %v292 = vld [vmem:[%s228 + $0x180] sm:$0xff]
      %v293 = vld [vmem:[%s228 + $0x188] sm:$0xff]
      %v294 = vld [vmem:[%s228 + $0x190] sm:$0xff]
      %v295 = vld [vmem:[%s228 + $0x198] sm:$0xff]
      %v296 = vld [vmem:[%s228 + $0x1a0] sm:$0xff]
      %v297 = vld [vmem:[%s228 + $0x1a8] sm:$0xff]
      %v298 = vld [vmem:[%s228 + $0x1b0] sm:$0xff]
      %v299 = vld [vmem:[%s228 + $0x1b8] sm:$0xff]
      %v300 = vld [vmem:[%s228 + $0x1c0] sm:$0xff]
      %v301 = vld [vmem:[%s228 + $0x1c8] sm:$0xff]
      %v302 = vld [vmem:[%s228 + $0x1d0] sm:$0xff]
      %v303 = vld [vmem:[%s228 + $0x1d8] sm:$0xff]
      %v304 = vld [vmem:[%s228 + $0x1e0] sm:$0xff]
      %v305 = vld [vmem:[%s228 + $0x1e8] sm:$0xff]
      %v306 = vld [vmem:[%s228 + $0x1f0] sm:$0xff]
      %v307 = vld [vmem:[%s228 + $0x1f8] sm:$0xff]
      %v308 = vld [vmem:[%s228 + $0x200] sm:$0xff]
      %v309 = vld [vmem:[%s228 + $0x208] sm:$0xff]
      %v310 = vld [vmem:[%s228 + $0x210] sm:$0xff]
      %v311 = vld [vmem:[%s228 + $0x218] sm:$0xff]
      %v312 = vld [vmem:[%s228 + $0x220] sm:$0xff]
      %v313 = vld [vmem:[%s228 + $0x228] sm:$0xff]
      %v314 = vld [vmem:[%s228 + $0x230] sm:$0xff]
      %v315 = vld [vmem:[%s228 + $0x238] sm:$0xff]
      %v316 = vld [vmem:[%s228 + $0x240] sm:$0xff]
      %v317 = vld [vmem:[%s228 + $0x248] sm:$0xff]
      %v318 = vld [vmem:[%s228 + $0x250] sm:$0xff]
      %v319 = vld [vmem:[%s228 + $0x258] sm:$0xff]
      %v320 = vld [vmem:[%s228 + $0x260] sm:$0xff]
      %v321 = vld [vmem:[%s228 + $0x268] sm:$0xff]
      %v322 = vld [vmem:[%s228 + $0x270] sm:$0xff]
      %v323 = vld [vmem:[%s228 + $0x278] sm:$0xff]
      %v324 = vld [vmem:[%s228 + $0x280] sm:$0xff]
      %v325 = vld [vmem:[%s228 + $0x288] sm:$0xff]
      %v326 = vld [vmem:[%s228 + $0x290] sm:$0xff]
      %v327 = vld [vmem:[%s228 + $0x298] sm:$0xff]
      %v328 = vld [vmem:[%s228 + $0x2a0] sm:$0xff]
      %v329 = vld [vmem:[%s228 + $0x2a8] sm:$0xff]
      %v330 = vld [vmem:[%s228 + $0x2b0] sm:$0xff]
      %v331 = vld [vmem:[%s228 + $0x2b8] sm:$0xff]
      %v332 = vld [vmem:[%s228 + $0x2c0] sm:$0xff]
      %v333 = vld [vmem:[%s228 + $0x2c8] sm:$0xff]
      %v334 = vld [vmem:[%s228 + $0x2d0] sm:$0xff]
      %v335 = vld [vmem:[%s228 + $0x2d8] sm:$0xff]
      %v336 = vld [vmem:[%s228 + $0x2e0] sm:$0xff]
      %v337 = vld [vmem:[%s228 + $0x2e8] sm:$0xff]
      %v338 = vld [vmem:[%s228 + $0x2f0] sm:$0xff]
      %v339 = vld [vmem:[%s228 + $0x2f8] sm:$0xff]
      %v340 = vld [vmem:[%s228 + $0x300] sm:$0xff]
      %v341 = vld [vmem:[%s228 + $0x308] sm:$0xff]
      %v342 = vld [vmem:[%s228 + $0x310] sm:$0xff]
      %v343 = vld [vmem:[%s228 + $0x318] sm:$0xff]
      %v344 = vld [vmem:[%s228 + $0x320] sm:$0xff]
      %v345 = vld [vmem:[%s228 + $0x328] sm:$0xff]
      %v346 = vld [vmem:[%s228 + $0x330] sm:$0xff]
      %v347 = vld [vmem:[%s228 + $0x338] sm:$0xff]
      %v348 = vld [vmem:[%s228 + $0x340] sm:$0xff]
      %v349 = vld [vmem:[%s228 + $0x348] sm:$0xff]
      %v350 = vld [vmem:[%s228 + $0x350] sm:$0xff]
      %v351 = vld [vmem:[%s228 + $0x358] sm:$0xff]
      %v352 = vld [vmem:[%s228 + $0x360] sm:$0xff]
      %v353 = vld [vmem:[%s228 + $0x368] sm:$0xff]
      %v354 = vld [vmem:[%s228 + $0x370] sm:$0xff]
      %v355 = vld [vmem:[%s228 + $0x378] sm:$0xff]
      %v356 = vld [vmem:[%s228 + $0x380] sm:$0xff]
      %v357 = vld [vmem:[%s228 + $0x388] sm:$0xff]
      %v358 = vld [vmem:[%s228 + $0x390] sm:$0xff]
      %v359 = vld [vmem:[%s228 + $0x398] sm:$0xff]
      %v360 = vld [vmem:[%s228 + $0x3a0] sm:$0xff]
      %v361 = vld [vmem:[%s228 + $0x3a8] sm:$0xff]
      %v362 = vld [vmem:[%s228 + $0x3b0] sm:$0xff]
      %v363 = vld [vmem:[%s228 + $0x3b8] sm:$0xff]
      %v364 = vld [vmem:[%s228 + $0x3c0] sm:$0xff]
      %v365 = vld [vmem:[%s228 + $0x3c8] sm:$0xff]
      %v366 = vld [vmem:[%s228 + $0x3d0] sm:$0xff]
      %v367 = vld [vmem:[%s228 + $0x3d8] sm:$0xff]
      %v368 = vld [vmem:[%s228 + $0x3e0] sm:$0xff]
      %v369 = vld [vmem:[%s228 + $0x3e8] sm:$0xff]
      %v370 = vld [vmem:[%s228 + $0x3f0] sm:$0xff]
      %v371 = vld [vmem:[%s228 + $0x3f8] sm:$0xff]
      %v372 = vld [vmem:[%s2] sm:$0x1]
      %v374 = vperm.slane %v372, 0
      %v376 = vmul.f32 %v244, %v374
      %v377 = vmul.f32 %v245, %v374
      %v378 = vmul.f32 %v246, %v374
      %v379 = vmul.f32 %v247, %v374
      %v380 = vmul.f32 %v248, %v374
      %v381 = vmul.f32 %v249, %v374
      %v382 = vmul.f32 %v250, %v374
      %v383 = vmul.f32 %v251, %v374
      %v384 = vmul.f32 %v252, %v374
      %v385 = vmul.f32 %v253, %v374
      %v386 = vmul.f32 %v254, %v374
      %v387 = vmul.f32 %v255, %v374
      %v388 = vmul.f32 %v256, %v374
      %v389 = vmul.f32 %v257, %v374
      %v390 = vmul.f32 %v258, %v374
      %v391 = vmul.f32 %v259, %v374
      %v392 = vmul.f32 %v260, %v374
      %v393 = vmul.f32 %v261, %v374
      %v394 = vmul.f32 %v262, %v374
      %v395 = vmul.f32 %v263, %v374
      %v396 = vmul.f32 %v264, %v374
      %v397 = vmul.f32 %v265, %v374
      %v398 = vmul.f32 %v266, %v374
      %v399 = vmul.f32 %v267, %v374
      %v400 = vmul.f32 %v268, %v374
      %v401 = vmul.f32 %v269, %v374
      %v402 = vmul.f32 %v270, %v374
      %v403 = vmul.f32 %v271, %v374
      %v404 = vmul.f32 %v272, %v374
      %v405 = vmul.f32 %v273, %v374
      %v406 = vmul.f32 %v274, %v374
      %v407 = vmul.f32 %v275, %v374
      %v408 = vmul.f32 %v276, %v374
      %v409 = vmul.f32 %v277, %v374
      %v410 = vmul.f32 %v278, %v374
      %v411 = vmul.f32 %v279, %v374
      %v412 = vmul.f32 %v280, %v374
      %v413 = vmul.f32 %v281, %v374
      %v414 = vmul.f32 %v282, %v374
      %v415 = vmul.f32 %v283, %v374
      %v416 = vmul.f32 %v284, %v374
      %v417 = vmul.f32 %v285, %v374
      %v418 = vmul.f32 %v286, %v374
      %v419 = vmul.f32 %v287, %v374
      %v420 = vmul.f32 %v288, %v374
      %v421 = vmul.f32 %v289, %v374
      %v422 = vmul.f32 %v290, %v374
      %v423 = vmul.f32 %v291, %v374
      %v424 = vmul.f32 %v292, %v374
      %v425 = vmul.f32 %v293, %v374
      %v426 = vmul.f32 %v294, %v374
      %v427 = vmul.f32 %v295, %v374
      %v428 = vmul.f32 %v296, %v374
      %v429 = vmul.f32 %v297, %v374
      %v430 = vmul.f32 %v298, %v374
      %v431 = vmul.f32 %v299, %v374
      %v432 = vmul.f32 %v300, %v374
      %v433 = vmul.f32 %v301, %v374
      %v434 = vmul.f32 %v302, %v374
      %v435 = vmul.f32 %v303, %v374
      %v436 = vmul.f32 %v304, %v374
      %v437 = vmul.f32 %v305, %v374
      %v438 = vmul.f32 %v306, %v374
      %v439 = vmul.f32 %v307, %v374
      %v440 = vmul.f32 %v308, %v374
      %v441 = vmul.f32 %v309, %v374
      %v442 = vmul.f32 %v310, %v374
      %v443 = vmul.f32 %v311, %v374
      %v444 = vmul.f32 %v312, %v374
      %v445 = vmul.f32 %v313, %v374
      %v446 = vmul.f32 %v314, %v374
      %v447 = vmul.f32 %v315, %v374
      %v448 = vmul.f32 %v316, %v374
      %v449 = vmul.f32 %v317, %v374
      %v450 = vmul.f32 %v318, %v374
      %v451 = vmul.f32 %v319, %v374
      %v452 = vmul.f32 %v320, %v374
      %v453 = vmul.f32 %v321, %v374
      %v454 = vmul.f32 %v322, %v374
      %v455 = vmul.f32 %v323, %v374
      %v456 = vmul.f32 %v324, %v374
      %v457 = vmul.f32 %v325, %v374
      %v458 = vmul.f32 %v326, %v374
      %v459 = vmul.f32 %v327, %v374
      %v460 = vmul.f32 %v328, %v374
      %v461 = vmul.f32 %v329, %v374
      %v462 = vmul.f32 %v330, %v374
      %v463 = vmul.f32 %v331, %v374
      %v464 = vmul.f32 %v332, %v374
      %v465 = vmul.f32 %v333, %v374
      %v466 = vmul.f32 %v334, %v374
      %v467 = vmul.f32 %v335, %v374
      %v468 = vmul.f32 %v336, %v374
      %v469 = vmul.f32 %v337, %v374
      %v470 = vmul.f32 %v338, %v374
      %v471 = vmul.f32 %v339, %v374
      %v472 = vmul.f32 %v340, %v374
      %v473 = vmul.f32 %v341, %v374
      %v474 = vmul.f32 %v342, %v374
      %v475 = vmul.f32 %v343, %v374
      %v476 = vmul.f32 %v344, %v374
      %v477 = vmul.f32 %v345, %v374
      %v478 = vmul.f32 %v346, %v374
      %v479 = vmul.f32 %v347, %v374
      %v480 = vmul.f32 %v348, %v374
      %v481 = vmul.f32 %v349, %v374
      %v482 = vmul.f32 %v350, %v374
      %v483 = vmul.f32 %v351, %v374
      %v484 = vmul.f32 %v352, %v374
      %v485 = vmul.f32 %v353, %v374
      %v486 = vmul.f32 %v354, %v374
      %v487 = vmul.f32 %v355, %v374
      %v488 = vmul.f32 %v356, %v374
      %v489 = vmul.f32 %v357, %v374
      %v490 = vmul.f32 %v358, %v374
      %v491 = vmul.f32 %v359, %v374
      %v492 = vmul.f32 %v360, %v374
      %v493 = vmul.f32 %v361, %v374
      %v494 = vmul.f32 %v362, %v374
      %v495 = vmul.f32 %v363, %v374
      %v496 = vmul.f32 %v364, %v374
      %v497 = vmul.f32 %v365, %v374
      %v498 = vmul.f32 %v366, %v374
      %v499 = vmul.f32 %v367, %v374
      %v500 = vmul.f32 %v368, %v374
      %v501 = vmul.f32 %v369, %v374
      %v502 = vmul.f32 %v370, %v374
      %v503 = vmul.f32 %v371, %v374
      %vm504 = vcmask 523264
      %v505 = vsel %vm504, %v376, 0.0
      %506 = vadd.xlane.f32.xlu0 %v505
      %v507 = vpop.xlane.xlu0 %506
      %v508 = vsel %vm504, %v377, 0.0
      %509 = vadd.xlane.f32.xlu0 %v508
      %v510 = vpop.xlane.xlu0 %509
      %v511 = vsel %vm504, %v378, 0.0
      %512 = vadd.xlane.f32.xlu0 %v511
      %v513 = vpop.xlane.xlu0 %512
      %v514 = vsel %vm504, %v379, 0.0
      %515 = vadd.xlane.f32.xlu0 %v514
      %v516 = vpop.xlane.xlu0 %515
      %v517 = vsel %vm504, %v380, 0.0
      %518 = vadd.xlane.f32.xlu0 %v517
      %v519 = vpop.xlane.xlu0 %518
      %v520 = vsel %vm504, %v381, 0.0
      %521 = vadd.xlane.f32.xlu0 %v520
      %v522 = vpop.xlane.xlu0 %521
      %v523 = vsel %vm504, %v382, 0.0
      %524 = vadd.xlane.f32.xlu0 %v523
      %v525 = vpop.xlane.xlu0 %524
      %v526 = vsel %vm504, %v383, 0.0
      %527 = vadd.xlane.f32.xlu0 %v526
      %v528 = vpop.xlane.xlu0 %527
      %v529 = vsel %vm504, %v384, 0.0
      %530 = vadd.xlane.f32.xlu0 %v529
      %v531 = vpop.xlane.xlu0 %530
      %v532 = vsel %vm504, %v385, 0.0
      %533 = vadd.xlane.f32.xlu0 %v532
      %v534 = vpop.xlane.xlu0 %533
      %v535 = vsel %vm504, %v386, 0.0
      %536 = vadd.xlane.f32.xlu0 %v535
      %v537 = vpop.xlane.xlu0 %536
      %v538 = vsel %vm504, %v387, 0.0
      %539 = vadd.xlane.f32.xlu0 %v538
      %v540 = vpop.xlane.xlu0 %539
      %v541 = vsel %vm504, %v388, 0.0
      %542 = vadd.xlane.f32.xlu0 %v541
      %v543 = vpop.xlane.xlu0 %542
      %v544 = vsel %vm504, %v389, 0.0
      %545 = vadd.xlane.f32.xlu0 %v544
      %v546 = vpop.xlane.xlu0 %545
      %v547 = vsel %vm504, %v390, 0.0
      %548 = vadd.xlane.f32.xlu0 %v547
      %v549 = vpop.xlane.xlu0 %548
      %v550 = vsel %vm504, %v391, 0.0
      %551 = vadd.xlane.f32.xlu0 %v550
      %v552 = vpop.xlane.xlu0 %551
      %v553 = vsel %vm504, %v392, 0.0
      %554 = vadd.xlane.f32.xlu0 %v553
      %v555 = vpop.xlane.xlu0 %554
      %v556 = vsel %vm504, %v393, 0.0
      %557 = vadd.xlane.f32.xlu0 %v556
      %v558 = vpop.xlane.xlu0 %557
      %v559 = vsel %vm504, %v394, 0.0
      %560 = vadd.xlane.f32.xlu0 %v559
      %v561 = vpop.xlane.xlu0 %560
      %v562 = vsel %vm504, %v395, 0.0
      %563 = vadd.xlane.f32.xlu0 %v562
      %v564 = vpop.xlane.xlu0 %563
      %v565 = vsel %vm504, %v396, 0.0
      %566 = vadd.xlane.f32.xlu0 %v565
      %v567 = vpop.xlane.xlu0 %566
      %v568 = vsel %vm504, %v397, 0.0
      %569 = vadd.xlane.f32.xlu0 %v568
      %v570 = vpop.xlane.xlu0 %569
      %v571 = vsel %vm504, %v398, 0.0
      %572 = vadd.xlane.f32.xlu0 %v571
      %v573 = vpop.xlane.xlu0 %572
      %v574 = vsel %vm504, %v399, 0.0
      %575 = vadd.xlane.f32.xlu0 %v574
      %v576 = vpop.xlane.xlu0 %575
      %v577 = vsel %vm504, %v400, 0.0
      %578 = vadd.xlane.f32.xlu0 %v577
      %v579 = vpop.xlane.xlu0 %578
      %v580 = vsel %vm504, %v401, 0.0
      %581 = vadd.xlane.f32.xlu0 %v580
      %v582 = vpop.xlane.xlu0 %581
      %v583 = vsel %vm504, %v402, 0.0
      %584 = vadd.xlane.f32.xlu0 %v583
      %v585 = vpop.xlane.xlu0 %584
      %v586 = vsel %vm504, %v403, 0.0
      %587 = vadd.xlane.f32.xlu0 %v586
      %v588 = vpop.xlane.xlu0 %587
      %v589 = vsel %vm504, %v404, 0.0
      %590 = vadd.xlane.f32.xlu0 %v589
      %v591 = vpop.xlane.xlu0 %590
      %v592 = vsel %vm504, %v405, 0.0
      %593 = vadd.xlane.f32.xlu0 %v592
      %v594 = vpop.xlane.xlu0 %593
      %v595 = vsel %vm504, %v406, 0.0
      %596 = vadd.xlane.f32.xlu0 %v595
      %v597 = vpop.xlane.xlu0 %596
      %v598 = vsel %vm504, %v407, 0.0
      %599 = vadd.xlane.f32.xlu0 %v598
      %v600 = vpop.xlane.xlu0 %599
      %v601 = vsel %vm504, %v408, 0.0
      %602 = vadd.xlane.f32.xlu0 %v601
      %v603 = vpop.xlane.xlu0 %602
      %v604 = vsel %vm504, %v409, 0.0
      %605 = vadd.xlane.f32.xlu0 %v604
      %v606 = vpop.xlane.xlu0 %605
      %v607 = vsel %vm504, %v410, 0.0
      %608 = vadd.xlane.f32.xlu0 %v607
      %v609 = vpop.xlane.xlu0 %608
      %v610 = vsel %vm504, %v411, 0.0
      %611 = vadd.xlane.f32.xlu0 %v610
      %v612 = vpop.xlane.xlu0 %611
      %v613 = vsel %vm504, %v412, 0.0
      %614 = vadd.xlane.f32.xlu0 %v613
      %v615 = vpop.xlane.xlu0 %614
      %v616 = vsel %vm504, %v413, 0.0
      %617 = vadd.xlane.f32.xlu0 %v616
      %v618 = vpop.xlane.xlu0 %617
      %v619 = vsel %vm504, %v414, 0.0
      %620 = vadd.xlane.f32.xlu0 %v619
      %v621 = vpop.xlane.xlu0 %620
      %v622 = vsel %vm504, %v415, 0.0
      %623 = vadd.xlane.f32.xlu0 %v622
      %v624 = vpop.xlane.xlu0 %623
      %v625 = vsel %vm504, %v416, 0.0
      %626 = vadd.xlane.f32.xlu0 %v625
      %v627 = vpop.xlane.xlu0 %626
      %v628 = vsel %vm504, %v417, 0.0
      %629 = vadd.xlane.f32.xlu0 %v628
      %v630 = vpop.xlane.xlu0 %629
      %v631 = vsel %vm504, %v418, 0.0
      %632 = vadd.xlane.f32.xlu0 %v631
      %v633 = vpop.xlane.xlu0 %632
      %v634 = vsel %vm504, %v419, 0.0
      %635 = vadd.xlane.f32.xlu0 %v634
      %v636 = vpop.xlane.xlu0 %635
      %v637 = vsel %vm504, %v420, 0.0
      %638 = vadd.xlane.f32.xlu0 %v637
      %v639 = vpop.xlane.xlu0 %638
      %v640 = vsel %vm504, %v421, 0.0
      %641 = vadd.xlane.f32.xlu0 %v640
      %v642 = vpop.xlane.xlu0 %641
      %v643 = vsel %vm504, %v422, 0.0
      %644 = vadd.xlane.f32.xlu0 %v643
      %v645 = vpop.xlane.xlu0 %644
      %v646 = vsel %vm504, %v423, 0.0
      %647 = vadd.xlane.f32.xlu0 %v646
      %v648 = vpop.xlane.xlu0 %647
      %v649 = vsel %vm504, %v424, 0.0
      %650 = vadd.xlane.f32.xlu0 %v649
      %v651 = vpop.xlane.xlu0 %650
      %v652 = vsel %vm504, %v425, 0.0
      %653 = vadd.xlane.f32.xlu0 %v652
      %v654 = vpop.xlane.xlu0 %653
      %v655 = vsel %vm504, %v426, 0.0
      %656 = vadd.xlane.f32.xlu0 %v655
      %v657 = vpop.xlane.xlu0 %656
      %v658 = vsel %vm504, %v427, 0.0
      %659 = vadd.xlane.f32.xlu0 %v658
      %v660 = vpop.xlane.xlu0 %659
      %v661 = vsel %vm504, %v428, 0.0
      %662 = vadd.xlane.f32.xlu0 %v661
      %v663 = vpop.xlane.xlu0 %662
      %v664 = vsel %vm504, %v429, 0.0
      %665 = vadd.xlane.f32.xlu0 %v664
      %v666 = vpop.xlane.xlu0 %665
      %v667 = vsel %vm504, %v430, 0.0
      %668 = vadd.xlane.f32.xlu0 %v667
      %v669 = vpop.xlane.xlu0 %668
      %v670 = vsel %vm504, %v431, 0.0
      %671 = vadd.xlane.f32.xlu0 %v670
      %v672 = vpop.xlane.xlu0 %671
      %v673 = vsel %vm504, %v432, 0.0
      %674 = vadd.xlane.f32.xlu0 %v673
      %v675 = vpop.xlane.xlu0 %674
      %v676 = vsel %vm504, %v433, 0.0
      %677 = vadd.xlane.f32.xlu0 %v676
      %v678 = vpop.xlane.xlu0 %677
      %v679 = vsel %vm504, %v434, 0.0
      %680 = vadd.xlane.f32.xlu0 %v679
      %v681 = vpop.xlane.xlu0 %680
      %v682 = vsel %vm504, %v435, 0.0
      %683 = vadd.xlane.f32.xlu0 %v682
      %v684 = vpop.xlane.xlu0 %683
      %v685 = vsel %vm504, %v436, 0.0
      %686 = vadd.xlane.f32.xlu0 %v685
      %v687 = vpop.xlane.xlu0 %686
      %v688 = vsel %vm504, %v437, 0.0
      %689 = vadd.xlane.f32.xlu0 %v688
      %v690 = vpop.xlane.xlu0 %689
      %v691 = vsel %vm504, %v438, 0.0
      %692 = vadd.xlane.f32.xlu0 %v691
      %v693 = vpop.xlane.xlu0 %692
      %v694 = vsel %vm504, %v439, 0.0
      %695 = vadd.xlane.f32.xlu0 %v694
      %v696 = vpop.xlane.xlu0 %695
      %v697 = vsel %vm504, %v440, 0.0
      %698 = vadd.xlane.f32.xlu0 %v697
      %v699 = vpop.xlane.xlu0 %698
      %v700 = vsel %vm504, %v441, 0.0
      %701 = vadd.xlane.f32.xlu0 %v700
      %v702 = vpop.xlane.xlu0 %701
      %v703 = vsel %vm504, %v442, 0.0
      %704 = vadd.xlane.f32.xlu0 %v703
      %v705 = vpop.xlane.xlu0 %704
      %v706 = vsel %vm504, %v443, 0.0
      %707 = vadd.xlane.f32.xlu0 %v706
      %v708 = vpop.xlane.xlu0 %707
      %v709 = vsel %vm504, %v444, 0.0
      %710 = vadd.xlane.f32.xlu0 %v709
      %v711 = vpop.xlane.xlu0 %710
      %v712 = vsel %vm504, %v445, 0.0
      %713 = vadd.xlane.f32.xlu0 %v712
      %v714 = vpop.xlane.xlu0 %713
      %v715 = vsel %vm504, %v446, 0.0
      %716 = vadd.xlane.f32.xlu0 %v715
      %v717 = vpop.xlane.xlu0 %716
      %v718 = vsel %vm504, %v447, 0.0
      %719 = vadd.xlane.f32.xlu0 %v718
      %v720 = vpop.xlane.xlu0 %719
      %v721 = vsel %vm504, %v448, 0.0
      %722 = vadd.xlane.f32.xlu0 %v721
      %v723 = vpop.xlane.xlu0 %722
      %v724 = vsel %vm504, %v449, 0.0
      %725 = vadd.xlane.f32.xlu0 %v724
      %v726 = vpop.xlane.xlu0 %725
      %v727 = vsel %vm504, %v450, 0.0
      %728 = vadd.xlane.f32.xlu0 %v727
      %v729 = vpop.xlane.xlu0 %728
      %v730 = vsel %vm504, %v451, 0.0
      %731 = vadd.xlane.f32.xlu0 %v730
      %v732 = vpop.xlane.xlu0 %731
      %v733 = vsel %vm504, %v452, 0.0
      %734 = vadd.xlane.f32.xlu0 %v733
      %v735 = vpop.xlane.xlu0 %734
      %v736 = vsel %vm504, %v453, 0.0
      %737 = vadd.xlane.f32.xlu0 %v736
      %v738 = vpop.xlane.xlu0 %737
      %v739 = vsel %vm504, %v454, 0.0
      %740 = vadd.xlane.f32.xlu0 %v739
      %v741 = vpop.xlane.xlu0 %740
      %v742 = vsel %vm504, %v455, 0.0
      %743 = vadd.xlane.f32.xlu0 %v742
      %v744 = vpop.xlane.xlu0 %743
      %v745 = vsel %vm504, %v456, 0.0
      %746 = vadd.xlane.f32.xlu0 %v745
      %v747 = vpop.xlane.xlu0 %746
      %v748 = vsel %vm504, %v457, 0.0
      %749 = vadd.xlane.f32.xlu0 %v748
      %v750 = vpop.xlane.xlu0 %749
      %v751 = vsel %vm504, %v458, 0.0
      %752 = vadd.xlane.f32.xlu0 %v751
      %v753 = vpop.xlane.xlu0 %752
      %v754 = vsel %vm504, %v459, 0.0
      %755 = vadd.xlane.f32.xlu0 %v754
      %v756 = vpop.xlane.xlu0 %755
      %v757 = vsel %vm504, %v460, 0.0
      %758 = vadd.xlane.f32.xlu0 %v757
      %v759 = vpop.xlane.xlu0 %758
      %v760 = vsel %vm504, %v461, 0.0
      %761 = vadd.xlane.f32.xlu0 %v760
      %v762 = vpop.xlane.xlu0 %761
      %v763 = vsel %vm504, %v462, 0.0
      %764 = vadd.xlane.f32.xlu0 %v763
      %v765 = vpop.xlane.xlu0 %764
      %v766 = vsel %vm504, %v463, 0.0
      %767 = vadd.xlane.f32.xlu0 %v766
      %v768 = vpop.xlane.xlu0 %767
      %v769 = vsel %vm504, %v464, 0.0
      %770 = vadd.xlane.f32.xlu0 %v769
      %v771 = vpop.xlane.xlu0 %770
      %v772 = vsel %vm504, %v465, 0.0
      %773 = vadd.xlane.f32.xlu0 %v772
      %v774 = vpop.xlane.xlu0 %773
      %v775 = vsel %vm504, %v466, 0.0
      %776 = vadd.xlane.f32.xlu0 %v775
      %v777 = vpop.xlane.xlu0 %776
      %v778 = vsel %vm504, %v467, 0.0
      %779 = vadd.xlane.f32.xlu0 %v778
      %v780 = vpop.xlane.xlu0 %779
      %v781 = vsel %vm504, %v468, 0.0
      %782 = vadd.xlane.f32.xlu0 %v781
      %v783 = vpop.xlane.xlu0 %782
      %v784 = vsel %vm504, %v469, 0.0
      %785 = vadd.xlane.f32.xlu0 %v784
      %v786 = vpop.xlane.xlu0 %785
      %v787 = vsel %vm504, %v470, 0.0
      %788 = vadd.xlane.f32.xlu0 %v787
      %v789 = vpop.xlane.xlu0 %788
      %v790 = vsel %vm504, %v471, 0.0
      %791 = vadd.xlane.f32.xlu0 %v790
      %v792 = vpop.xlane.xlu0 %791
      %v793 = vsel %vm504, %v472, 0.0
      %794 = vadd.xlane.f32.xlu0 %v793
      %v795 = vpop.xlane.xlu0 %794
      %v796 = vsel %vm504, %v473, 0.0
      %797 = vadd.xlane.f32.xlu0 %v796
      %v798 = vpop.xlane.xlu0 %797
      %v799 = vsel %vm504, %v474, 0.0
      %800 = vadd.xlane.f32.xlu0 %v799
      %v801 = vpop.xlane.xlu0 %800
      %v802 = vsel %vm504, %v475, 0.0
      %803 = vadd.xlane.f32.xlu0 %v802
      %v804 = vpop.xlane.xlu0 %803
      %v805 = vsel %vm504, %v476, 0.0
      %806 = vadd.xlane.f32.xlu0 %v805
      %v807 = vpop.xlane.xlu0 %806
      %v808 = vsel %vm504, %v477, 0.0
      %809 = vadd.xlane.f32.xlu0 %v808
      %v810 = vpop.xlane.xlu0 %809
      %v811 = vsel %vm504, %v478, 0.0
      %812 = vadd.xlane.f32.xlu0 %v811
      %v813 = vpop.xlane.xlu0 %812
      %v814 = vsel %vm504, %v479, 0.0
      %815 = vadd.xlane.f32.xlu0 %v814
      %v816 = vpop.xlane.xlu0 %815
      %v817 = vsel %vm504, %v480, 0.0
      %818 = vadd.xlane.f32.xlu0 %v817
      %v819 = vpop.xlane.xlu0 %818
      %v820 = vsel %vm504, %v481, 0.0
      %821 = vadd.xlane.f32.xlu0 %v820
      %v822 = vpop.xlane.xlu0 %821
      %v823 = vsel %vm504, %v482, 0.0
      %824 = vadd.xlane.f32.xlu0 %v823
      %v825 = vpop.xlane.xlu0 %824
      %v826 = vsel %vm504, %v483, 0.0
      %827 = vadd.xlane.f32.xlu0 %v826
      %v828 = vpop.xlane.xlu0 %827
      %v829 = vsel %vm504, %v484, 0.0
      %830 = vadd.xlane.f32.xlu0 %v829
      %v831 = vpop.xlane.xlu0 %830
      %v832 = vsel %vm504, %v485, 0.0
      %833 = vadd.xlane.f32.xlu0 %v832
      %v834 = vpop.xlane.xlu0 %833
      %v835 = vsel %vm504, %v486, 0.0
      %836 = vadd.xlane.f32.xlu0 %v835
      %v837 = vpop.xlane.xlu0 %836
      %v838 = vsel %vm504, %v487, 0.0
      %839 = vadd.xlane.f32.xlu0 %v838
      %v840 = vpop.xlane.xlu0 %839
      %v841 = vsel %vm504, %v488, 0.0
      %842 = vadd.xlane.f32.xlu0 %v841
      %v843 = vpop.xlane.xlu0 %842
      %v844 = vsel %vm504, %v489, 0.0
      %845 = vadd.xlane.f32.xlu0 %v844
      %v846 = vpop.xlane.xlu0 %845
      %v847 = vsel %vm504, %v490, 0.0
      %848 = vadd.xlane.f32.xlu0 %v847
      %v849 = vpop.xlane.xlu0 %848
      %v850 = vsel %vm504, %v491, 0.0
      %851 = vadd.xlane.f32.xlu0 %v850
      %v852 = vpop.xlane.xlu0 %851
      %v853 = vsel %vm504, %v492, 0.0
      %854 = vadd.xlane.f32.xlu0 %v853
      %v855 = vpop.xlane.xlu0 %854
      %v856 = vsel %vm504, %v493, 0.0
      %857 = vadd.xlane.f32.xlu0 %v856
      %v858 = vpop.xlane.xlu0 %857
      %v859 = vsel %vm504, %v494, 0.0
      %860 = vadd.xlane.f32.xlu0 %v859
      %v861 = vpop.xlane.xlu0 %860
      %v862 = vsel %vm504, %v495, 0.0
      %863 = vadd.xlane.f32.xlu0 %v862
      %v864 = vpop.xlane.xlu0 %863
      %v865 = vsel %vm504, %v496, 0.0
      %866 = vadd.xlane.f32.xlu0 %v865
      %v867 = vpop.xlane.xlu0 %866
      %v868 = vsel %vm504, %v497, 0.0
      %869 = vadd.xlane.f32.xlu0 %v868
      %v870 = vpop.xlane.xlu0 %869
      %v871 = vsel %vm504, %v498, 0.0
      %872 = vadd.xlane.f32.xlu0 %v871
      %v873 = vpop.xlane.xlu0 %872
      %v874 = vsel %vm504, %v499, 0.0
      %875 = vadd.xlane.f32.xlu0 %v874
      %v876 = vpop.xlane.xlu0 %875
      %v877 = vsel %vm504, %v500, 0.0
      %878 = vadd.xlane.f32.xlu0 %v877
      %v879 = vpop.xlane.xlu0 %878
      %v880 = vsel %vm504, %v501, 0.0
      %881 = vadd.xlane.f32.xlu0 %v880
      %v882 = vpop.xlane.xlu0 %881
      %v883 = vsel %vm504, %v502, 0.0
      %884 = vadd.xlane.f32.xlu0 %v883
      %v885 = vpop.xlane.xlu0 %884
      %v886 = vsel %vm504, %v503, 0.0
      %887 = vadd.xlane.f32.xlu0 %v886
      %v888 = vpop.xlane.xlu0 %887
      %v889 = vld [vmem:[%s222] sm:$0xff]
      %v890 = vld [vmem:[%s222 + $0x8] sm:$0xff]
      %v891 = vld [vmem:[%s222 + $0x10] sm:$0xff]
      %s892 = smul.u32 %s21, 1024
      %v893 = vstv %s892
      %v894 = vsub.s32 %v889, %v893
      %v895 = vsub.s32 %v890, %v893
      %v896 = vsub.s32 %v891, %v893
      %v897 = vlaneseq
      %v898 = vand.u32 %v897, 127
      %v899 = vadd.s32 %v898, 128
      %v900 = vadd.s32 %v898, 256
      %v901 = vadd.s32 %v898, 384
      %v902 = vadd.s32 %v898, 512
      %v903 = vadd.s32 %v898, 640
      %v904 = vadd.s32 %v898, 768
      %v905 = vadd.s32 %v898, 896
      %906 = vset.pattern.permute.xlu0 0
      %907 = vperm.xlu0 %906, %v894
      %v908 = vpop.permute.xlu0 %907
      %909 = vset.pattern.permute.xlu0 0
      %910 = vperm.xlu0 %909, %v895
      %v911 = vpop.permute.xlu0 %910
      %912 = vset.pattern.permute.xlu0 0
      %913 = vperm.xlu0 %912, %v896
      %v914 = vpop.permute.xlu0 %913
      %vm915 = vcmp.eq.s32.totalorder %v898, %v908
      %vm916 = vcmp.eq.s32.totalorder %v899, %v908
      %vm917 = vcmp.eq.s32.totalorder %v900, %v908
      %vm918 = vcmp.eq.s32.totalorder %v901, %v908
      %vm919 = vcmp.eq.s32.totalorder %v902, %v908
      %vm920 = vcmp.eq.s32.totalorder %v903, %v908
      %vm921 = vcmp.eq.s32.totalorder %v904, %v908
      %vm922 = vcmp.eq.s32.totalorder %v905, %v908
      %vm923 = vcmp.eq.s32.totalorder %v898, %v911
      %vm924 = vcmp.eq.s32.totalorder %v899, %v911
      %vm925 = vcmp.eq.s32.totalorder %v900, %v911
      %vm926 = vcmp.eq.s32.totalorder %v901, %v911
      %vm927 = vcmp.eq.s32.totalorder %v902, %v911
      %vm928 = vcmp.eq.s32.totalorder %v903, %v911
      %vm929 = vcmp.eq.s32.totalorder %v904, %v911
      %vm930 = vcmp.eq.s32.totalorder %v905, %v911
      %vm931 = vcmp.eq.s32.totalorder %v898, %v914
      %vm932 = vcmp.eq.s32.totalorder %v899, %v914
      %vm933 = vcmp.eq.s32.totalorder %v900, %v914
      %vm934 = vcmp.eq.s32.totalorder %v901, %v914
      %vm935 = vcmp.eq.s32.totalorder %v902, %v914
      %vm936 = vcmp.eq.s32.totalorder %v903, %v914
      %vm937 = vcmp.eq.s32.totalorder %v904, %v914
      %vm938 = vcmp.eq.s32.totalorder %v905, %v914
      %v939 = vsel %vm915, 1, 0
      %v940 = vsel %vm916, 1, 0
      %v941 = vsel %vm917, 1, 0
      %v942 = vsel %vm918, 1, 0
      %v943 = vsel %vm919, 1, 0
      %v944 = vsel %vm920, 1, 0
      %v945 = vsel %vm921, 1, 0
      %v946 = vsel %vm922, 1, 0
      %v947 = vsel %vm923, 1, 0
      %v948 = vsel %vm924, 1, 0
      %v949 = vsel %vm925, 1, 0
      %v950 = vsel %vm926, 1, 0
      %v951 = vsel %vm927, 1, 0
      %v952 = vsel %vm928, 1, 0
      %v953 = vsel %vm929, 1, 0
      %v954 = vsel %vm930, 1, 0
      %v955 = vsel %vm931, 1, 0
      %v956 = vsel %vm932, 1, 0
      %v957 = vsel %vm933, 1, 0
      %v958 = vsel %vm934, 1, 0
      %v959 = vsel %vm935, 1, 0
      %v960 = vsel %vm936, 1, 0
      %v961 = vsel %vm937, 1, 0
      %v962 = vsel %vm938, 1, 0
      %963 = vset.pattern.permute.xlu0 1
      %964 = vperm.xlu0 %963, %v894
      %v965 = vpop.permute.xlu0 %964
      %966 = vset.pattern.permute.xlu0 1
      %967 = vperm.xlu0 %966, %v895
      %v968 = vpop.permute.xlu0 %967
      %969 = vset.pattern.permute.xlu0 1
      %970 = vperm.xlu0 %969, %v896
      %v971 = vpop.permute.xlu0 %970
      %vm972 = vcmp.eq.s32.totalorder %v898, %v965
      %vm973 = vcmp.eq.s32.totalorder %v899, %v965
      %vm974 = vcmp.eq.s32.totalorder %v900, %v965
      %vm975 = vcmp.eq.s32.totalorder %v901, %v965
      %vm976 = vcmp.eq.s32.totalorder %v902, %v965
      %vm977 = vcmp.eq.s32.totalorder %v903, %v965
      %vm978 = vcmp.eq.s32.totalorder %v904, %v965
      %vm979 = vcmp.eq.s32.totalorder %v905, %v965
      %vm980 = vcmp.eq.s32.totalorder %v898, %v968
      %vm981 = vcmp.eq.s32.totalorder %v899, %v968
      %vm982 = vcmp.eq.s32.totalorder %v900, %v968
      %vm983 = vcmp.eq.s32.totalorder %v901, %v968
      %vm984 = vcmp.eq.s32.totalorder %v902, %v968
      %vm985 = vcmp.eq.s32.totalorder %v903, %v968
      %vm986 = vcmp.eq.s32.totalorder %v904, %v968
      %vm987 = vcmp.eq.s32.totalorder %v905, %v968
      %vm988 = vcmp.eq.s32.totalorder %v898, %v971
      %vm989 = vcmp.eq.s32.totalorder %v899, %v971
      %vm990 = vcmp.eq.s32.totalorder %v900, %v971
      %vm991 = vcmp.eq.s32.totalorder %v901, %v971
      %vm992 = vcmp.eq.s32.totalorder %v902, %v971
      %vm993 = vcmp.eq.s32.totalorder %v903, %v971
      %vm994 = vcmp.eq.s32.totalorder %v904, %v971
      %vm995 = vcmp.eq.s32.totalorder %v905, %v971
      %v996 = vsel %vm972, 1, 0
      %v997 = vsel %vm973, 1, 0
      %v998 = vsel %vm974, 1, 0
      %v999 = vsel %vm975, 1, 0
      %v1000 = vsel %vm976, 1, 0
      %v1001 = vsel %vm977, 1, 0
      %v1002 = vsel %vm978, 1, 0
      %v1003 = vsel %vm979, 1, 0
      %v1004 = vsel %vm980, 1, 0
      %v1005 = vsel %vm981, 1, 0
      %v1006 = vsel %vm982, 1, 0
      %v1007 = vsel %vm983, 1, 0
      %v1008 = vsel %vm984, 1, 0
      %v1009 = vsel %vm985, 1, 0
      %v1010 = vsel %vm986, 1, 0
      %v1011 = vsel %vm987, 1, 0
      %v1012 = vsel %vm988, 1, 0
      %v1013 = vsel %vm989, 1, 0
      %v1014 = vsel %vm990, 1, 0
      %v1015 = vsel %vm991, 1, 0
      %v1016 = vsel %vm992, 1, 0
      %v1017 = vsel %vm993, 1, 0
      %v1018 = vsel %vm994, 1, 0
      %v1019 = vsel %vm995, 1, 0
      %v1020 = vadd.s32 %v939, %v996
      %v1021 = vadd.s32 %v940, %v997
      %v1022 = vadd.s32 %v941, %v998
      %v1023 = vadd.s32 %v942, %v999
      %v1024 = vadd.s32 %v943, %v1000
      %v1025 = vadd.s32 %v944, %v1001
      %v1026 = vadd.s32 %v945, %v1002
      %v1027 = vadd.s32 %v946, %v1003
      %v1028 = vadd.s32 %v947, %v1004
      %v1029 = vadd.s32 %v948, %v1005
      %v1030 = vadd.s32 %v949, %v1006
      %v1031 = vadd.s32 %v950, %v1007
      %v1032 = vadd.s32 %v951, %v1008
      %v1033 = vadd.s32 %v952, %v1009
      %v1034 = vadd.s32 %v953, %v1010
      %v1035 = vadd.s32 %v954, %v1011
      %v1036 = vadd.s32 %v955, %v1012
      %v1037 = vadd.s32 %v956, %v1013
      %v1038 = vadd.s32 %v957, %v1014
      %v1039 = vadd.s32 %v958, %v1015
      %v1040 = vadd.s32 %v959, %v1016
      %v1041 = vadd.s32 %v960, %v1017
      %v1042 = vadd.s32 %v961, %v1018
      %v1043 = vadd.s32 %v962, %v1019
      %1044 = vset.pattern.permute.xlu0 2
      %1045 = vperm.xlu0 %1044, %v894
      %v1046 = vpop.permute.xlu0 %1045
      %1047 = vset.pattern.permute.xlu0 2
      %1048 = vperm.xlu0 %1047, %v895
      %v1049 = vpop.permute.xlu0 %1048
      %1050 = vset.pattern.permute.xlu0 2
      %1051 = vperm.xlu0 %1050, %v896
      %v1052 = vpop.permute.xlu0 %1051
      %vm1053 = vcmp.eq.s32.totalorder %v898, %v1046
      %vm1054 = vcmp.eq.s32.totalorder %v899, %v1046
      %vm1055 = vcmp.eq.s32.totalorder %v900, %v1046
      %vm1056 = vcmp.eq.s32.totalorder %v901, %v1046
      %vm1057 = vcmp.eq.s32.totalorder %v902, %v1046
      %vm1058 = vcmp.eq.s32.totalorder %v903, %v1046
      %vm1059 = vcmp.eq.s32.totalorder %v904, %v1046
      %vm1060 = vcmp.eq.s32.totalorder %v905, %v1046
      %vm1061 = vcmp.eq.s32.totalorder %v898, %v1049
      %vm1062 = vcmp.eq.s32.totalorder %v899, %v1049
      %vm1063 = vcmp.eq.s32.totalorder %v900, %v1049
      %vm1064 = vcmp.eq.s32.totalorder %v901, %v1049
      %vm1065 = vcmp.eq.s32.totalorder %v902, %v1049
      %vm1066 = vcmp.eq.s32.totalorder %v903, %v1049
      %vm1067 = vcmp.eq.s32.totalorder %v904, %v1049
      %vm1068 = vcmp.eq.s32.totalorder %v905, %v1049
      %vm1069 = vcmp.eq.s32.totalorder %v898, %v1052
      %vm1070 = vcmp.eq.s32.totalorder %v899, %v1052
      %vm1071 = vcmp.eq.s32.totalorder %v900, %v1052
      %vm1072 = vcmp.eq.s32.totalorder %v901, %v1052
      %vm1073 = vcmp.eq.s32.totalorder %v902, %v1052
      %vm1074 = vcmp.eq.s32.totalorder %v903, %v1052
      %vm1075 = vcmp.eq.s32.totalorder %v904, %v1052
      %vm1076 = vcmp.eq.s32.totalorder %v905, %v1052
      %v1077 = vsel %vm1053, 1, 0
      %v1078 = vsel %vm1054, 1, 0
      %v1079 = vsel %vm1055, 1, 0
      %v1080 = vsel %vm1056, 1, 0
      %v1081 = vsel %vm1057, 1, 0
      %v1082 = vsel %vm1058, 1, 0
      %v1083 = vsel %vm1059, 1, 0
      %v1084 = vsel %vm1060, 1, 0
      %v1085 = vsel %vm1061, 1, 0
      %v1086 = vsel %vm1062, 1, 0
      %v1087 = vsel %vm1063, 1, 0
      %v1088 = vsel %vm1064, 1, 0
      %v1089 = vsel %vm1065, 1, 0
      %v1090 = vsel %vm1066, 1, 0
      %v1091 = vsel %vm1067, 1, 0
      %v1092 = vsel %vm1068, 1, 0
      %v1093 = vsel %vm1069, 1, 0
      %v1094 = vsel %vm1070, 1, 0
      %v1095 = vsel %vm1071, 1, 0
      %v1096 = vsel %vm1072, 1, 0
      %v1097 = vsel %vm1073, 1, 0
      %v1098 = vsel %vm1074, 1, 0
      %v1099 = vsel %vm1075, 1, 0
      %v1100 = vsel %vm1076, 1, 0
      %v1101 = vadd.s32 %v1020, %v1077
      %v1102 = vadd.s32 %v1021, %v1078
      %v1103 = vadd.s32 %v1022, %v1079
      %v1104 = vadd.s32 %v1023, %v1080
      %v1105 = vadd.s32 %v1024, %v1081
      %v1106 = vadd.s32 %v1025, %v1082
      %v1107 = vadd.s32 %v1026, %v1083
      %v1108 = vadd.s32 %v1027, %v1084
      %v1109 = vadd.s32 %v1028, %v1085
      %v1110 = vadd.s32 %v1029, %v1086
      %v1111 = vadd.s32 %v1030, %v1087
      %v1112 = vadd.s32 %v1031, %v1088
      %v1113 = vadd.s32 %v1032, %v1089
      %v1114 = vadd.s32 %v1033, %v1090
      %v1115 = vadd.s32 %v1034, %v1091
      %v1116 = vadd.s32 %v1035, %v1092
      %v1117 = vadd.s32 %v1036, %v1093
      %v1118 = vadd.s32 %v1037, %v1094
      %v1119 = vadd.s32 %v1038, %v1095
      %v1120 = vadd.s32 %v1039, %v1096
      %v1121 = vadd.s32 %v1040, %v1097
      %v1122 = vadd.s32 %v1041, %v1098
      %v1123 = vadd.s32 %v1042, %v1099
      %v1124 = vadd.s32 %v1043, %v1100
      %1125 = vset.pattern.permute.xlu0 3
      %1126 = vperm.xlu0 %1125, %v894
      %v1127 = vpop.permute.xlu0 %1126
      %1128 = vset.pattern.permute.xlu0 3
      %1129 = vperm.xlu0 %1128, %v895
      %v1130 = vpop.permute.xlu0 %1129
      %1131 = vset.pattern.permute.xlu0 3
      %1132 = vperm.xlu0 %1131, %v896
      %v1133 = vpop.permute.xlu0 %1132
      %vm1134 = vcmp.eq.s32.totalorder %v898, %v1127
      %vm1135 = vcmp.eq.s32.totalorder %v899, %v1127
      %vm1136 = vcmp.eq.s32.totalorder %v900, %v1127
      %vm1137 = vcmp.eq.s32.totalorder %v901, %v1127
      %vm1138 = vcmp.eq.s32.totalorder %v902, %v1127
      %vm1139 = vcmp.eq.s32.totalorder %v903, %v1127
      %vm1140 = vcmp.eq.s32.totalorder %v904, %v1127
      %vm1141 = vcmp.eq.s32.totalorder %v905, %v1127
      %vm1142 = vcmp.eq.s32.totalorder %v898, %v1130
      %vm1143 = vcmp.eq.s32.totalorder %v899, %v1130
      %vm1144 = vcmp.eq.s32.totalorder %v900, %v1130
      %vm1145 = vcmp.eq.s32.totalorder %v901, %v1130
      %vm1146 = vcmp.eq.s32.totalorder %v902, %v1130
      %vm1147 = vcmp.eq.s32.totalorder %v903, %v1130
      %vm1148 = vcmp.eq.s32.totalorder %v904, %v1130
      %vm1149 = vcmp.eq.s32.totalorder %v905, %v1130
      %vm1150 = vcmp.eq.s32.totalorder %v898, %v1133
      %vm1151 = vcmp.eq.s32.totalorder %v899, %v1133
      %vm1152 = vcmp.eq.s32.totalorder %v900, %v1133
      %vm1153 = vcmp.eq.s32.totalorder %v901, %v1133
      %vm1154 = vcmp.eq.s32.totalorder %v902, %v1133
      %vm1155 = vcmp.eq.s32.totalorder %v903, %v1133
      %vm1156 = vcmp.eq.s32.totalorder %v904, %v1133
      %vm1157 = vcmp.eq.s32.totalorder %v905, %v1133
      %v1158 = vsel %vm1134, 1, 0
      %v1159 = vsel %vm1135, 1, 0
      %v1160 = vsel %vm1136, 1, 0
      %v1161 = vsel %vm1137, 1, 0
      %v1162 = vsel %vm1138, 1, 0
      %v1163 = vsel %vm1139, 1, 0
      %v1164 = vsel %vm1140, 1, 0
      %v1165 = vsel %vm1141, 1, 0
      %v1166 = vsel %vm1142, 1, 0
      %v1167 = vsel %vm1143, 1, 0
      %v1168 = vsel %vm1144, 1, 0
      %v1169 = vsel %vm1145, 1, 0
      %v1170 = vsel %vm1146, 1, 0
      %v1171 = vsel %vm1147, 1, 0
      %v1172 = vsel %vm1148, 1, 0
      %v1173 = vsel %vm1149, 1, 0
      %v1174 = vsel %vm1150, 1, 0
      %v1175 = vsel %vm1151, 1, 0
      %v1176 = vsel %vm1152, 1, 0
      %v1177 = vsel %vm1153, 1, 0
      %v1178 = vsel %vm1154, 1, 0
      %v1179 = vsel %vm1155, 1, 0
      %v1180 = vsel %vm1156, 1, 0
      %v1181 = vsel %vm1157, 1, 0
      %v1182 = vadd.s32 %v1101, %v1158
      %v1183 = vadd.s32 %v1102, %v1159
      %v1184 = vadd.s32 %v1103, %v1160
      %v1185 = vadd.s32 %v1104, %v1161
      %v1186 = vadd.s32 %v1105, %v1162
      %v1187 = vadd.s32 %v1106, %v1163
      %v1188 = vadd.s32 %v1107, %v1164
      %v1189 = vadd.s32 %v1108, %v1165
      %v1190 = vadd.s32 %v1109, %v1166
      %v1191 = vadd.s32 %v1110, %v1167
      %v1192 = vadd.s32 %v1111, %v1168
      %v1193 = vadd.s32 %v1112, %v1169
      %v1194 = vadd.s32 %v1113, %v1170
      %v1195 = vadd.s32 %v1114, %v1171
      %v1196 = vadd.s32 %v1115, %v1172
      %v1197 = vadd.s32 %v1116, %v1173
      %v1198 = vadd.s32 %v1117, %v1174
      %v1199 = vadd.s32 %v1118, %v1175
      %v1200 = vadd.s32 %v1119, %v1176
      %v1201 = vadd.s32 %v1120, %v1177
      %v1202 = vadd.s32 %v1121, %v1178
      %v1203 = vadd.s32 %v1122, %v1179
      %v1204 = vadd.s32 %v1123, %v1180
      %v1205 = vadd.s32 %v1124, %v1181
      %1206 = vset.pattern.permute.xlu0 4
      %1207 = vperm.xlu0 %1206, %v894
      %v1208 = vpop.permute.xlu0 %1207
      %1209 = vset.pattern.permute.xlu0 4
      %1210 = vperm.xlu0 %1209, %v895
      %v1211 = vpop.permute.xlu0 %1210
      %1212 = vset.pattern.permute.xlu0 4
      %1213 = vperm.xlu0 %1212, %v896
      %v1214 = vpop.permute.xlu0 %1213
      %vm1215 = vcmp.eq.s32.totalorder %v898, %v1208
      %vm1216 = vcmp.eq.s32.totalorder %v899, %v1208
      %vm1217 = vcmp.eq.s32.totalorder %v900, %v1208
      %vm1218 = vcmp.eq.s32.totalorder %v901, %v1208
      %vm1219 = vcmp.eq.s32.totalorder %v902, %v1208
      %vm1220 = vcmp.eq.s32.totalorder %v903, %v1208
      %vm1221 = vcmp.eq.s32.totalorder %v904, %v1208
      %vm1222 = vcmp.eq.s32.totalorder %v905, %v1208
      %vm1223 = vcmp.eq.s32.totalorder %v898, %v1211
      %vm1224 = vcmp.eq.s32.totalorder %v899, %v1211
      %vm1225 = vcmp.eq.s32.totalorder %v900, %v1211
      %vm1226 = vcmp.eq.s32.totalorder %v901, %v1211
      %vm1227 = vcmp.eq.s32.totalorder %v902, %v1211
      %vm1228 = vcmp.eq.s32.totalorder %v903, %v1211
      %vm1229 = vcmp.eq.s32.totalorder %v904, %v1211
      %vm1230 = vcmp.eq.s32.totalorder %v905, %v1211
      %vm1231 = vcmp.eq.s32.totalorder %v898, %v1214
      %vm1232 = vcmp.eq.s32.totalorder %v899, %v1214
      %vm1233 = vcmp.eq.s32.totalorder %v900, %v1214
      %vm1234 = vcmp.eq.s32.totalorder %v901, %v1214
      %vm1235 = vcmp.eq.s32.totalorder %v902, %v1214
      %vm1236 = vcmp.eq.s32.totalorder %v903, %v1214
      %vm1237 = vcmp.eq.s32.totalorder %v904, %v1214
      %vm1238 = vcmp.eq.s32.totalorder %v905, %v1214
      %v1239 = vsel %vm1215, 1, 0
      %v1240 = vsel %vm1216, 1, 0
      %v1241 = vsel %vm1217, 1, 0
      %v1242 = vsel %vm1218, 1, 0
      %v1243 = vsel %vm1219, 1, 0
      %v1244 = vsel %vm1220, 1, 0
      %v1245 = vsel %vm1221, 1, 0
      %v1246 = vsel %vm1222, 1, 0
      %v1247 = vsel %vm1223, 1, 0
      %v1248 = vsel %vm1224, 1, 0
      %v1249 = vsel %vm1225, 1, 0
      %v1250 = vsel %vm1226, 1, 0
      %v1251 = vsel %vm1227, 1, 0
      %v1252 = vsel %vm1228, 1, 0
      %v1253 = vsel %vm1229, 1, 0
      %v1254 = vsel %vm1230, 1, 0
      %v1255 = vsel %vm1231, 1, 0
      %v1256 = vsel %vm1232, 1, 0
      %v1257 = vsel %vm1233, 1, 0
      %v1258 = vsel %vm1234, 1, 0
      %v1259 = vsel %vm1235, 1, 0
      %v1260 = vsel %vm1236, 1, 0
      %v1261 = vsel %vm1237, 1, 0
      %v1262 = vsel %vm1238, 1, 0
      %v1263 = vadd.s32 %v1182, %v1239
      %v1264 = vadd.s32 %v1183, %v1240
      %v1265 = vadd.s32 %v1184, %v1241
      %v1266 = vadd.s32 %v1185, %v1242
      %v1267 = vadd.s32 %v1186, %v1243
      %v1268 = vadd.s32 %v1187, %v1244
      %v1269 = vadd.s32 %v1188, %v1245
      %v1270 = vadd.s32 %v1189, %v1246
      %v1271 = vadd.s32 %v1190, %v1247
      %v1272 = vadd.s32 %v1191, %v1248
      %v1273 = vadd.s32 %v1192, %v1249
      %v1274 = vadd.s32 %v1193, %v1250
      %v1275 = vadd.s32 %v1194, %v1251
      %v1276 = vadd.s32 %v1195, %v1252
      %v1277 = vadd.s32 %v1196, %v1253
      %v1278 = vadd.s32 %v1197, %v1254
      %v1279 = vadd.s32 %v1198, %v1255
      %v1280 = vadd.s32 %v1199, %v1256
      %v1281 = vadd.s32 %v1200, %v1257
      %v1282 = vadd.s32 %v1201, %v1258
      %v1283 = vadd.s32 %v1202, %v1259
      %v1284 = vadd.s32 %v1203, %v1260
      %v1285 = vadd.s32 %v1204, %v1261
      %v1286 = vadd.s32 %v1205, %v1262
      %1287 = vset.pattern.permute.xlu0 5
      %1288 = vperm.xlu0 %1287, %v894
      %v1289 = vpop.permute.xlu0 %1288
      %1290 = vset.pattern.permute.xlu0 5
      %1291 = vperm.xlu0 %1290, %v895
      %v1292 = vpop.permute.xlu0 %1291
      %1293 = vset.pattern.permute.xlu0 5
      %1294 = vperm.xlu0 %1293, %v896
      %v1295 = vpop.permute.xlu0 %1294
      %vm1296 = vcmp.eq.s32.totalorder %v898, %v1289
      %vm1297 = vcmp.eq.s32.totalorder %v899, %v1289
      %vm1298 = vcmp.eq.s32.totalorder %v900, %v1289
      %vm1299 = vcmp.eq.s32.totalorder %v901, %v1289
      %vm1300 = vcmp.eq.s32.totalorder %v902, %v1289
      %vm1301 = vcmp.eq.s32.totalorder %v903, %v1289
      %vm1302 = vcmp.eq.s32.totalorder %v904, %v1289
      %vm1303 = vcmp.eq.s32.totalorder %v905, %v1289
      %vm1304 = vcmp.eq.s32.totalorder %v898, %v1292
      %vm1305 = vcmp.eq.s32.totalorder %v899, %v1292
      %vm1306 = vcmp.eq.s32.totalorder %v900, %v1292
      %vm1307 = vcmp.eq.s32.totalorder %v901, %v1292
      %vm1308 = vcmp.eq.s32.totalorder %v902, %v1292
      %vm1309 = vcmp.eq.s32.totalorder %v903, %v1292
      %vm1310 = vcmp.eq.s32.totalorder %v904, %v1292
      %vm1311 = vcmp.eq.s32.totalorder %v905, %v1292
      %vm1312 = vcmp.eq.s32.totalorder %v898, %v1295
      %vm1313 = vcmp.eq.s32.totalorder %v899, %v1295
      %vm1314 = vcmp.eq.s32.totalorder %v900, %v1295
      %vm1315 = vcmp.eq.s32.totalorder %v901, %v1295
      %vm1316 = vcmp.eq.s32.totalorder %v902, %v1295
      %vm1317 = vcmp.eq.s32.totalorder %v903, %v1295
      %vm1318 = vcmp.eq.s32.totalorder %v904, %v1295
      %vm1319 = vcmp.eq.s32.totalorder %v905, %v1295
      %v1320 = vsel %vm1296, 1, 0
      %v1321 = vsel %vm1297, 1, 0
      %v1322 = vsel %vm1298, 1, 0
      %v1323 = vsel %vm1299, 1, 0
      %v1324 = vsel %vm1300, 1, 0
      %v1325 = vsel %vm1301, 1, 0
      %v1326 = vsel %vm1302, 1, 0
      %v1327 = vsel %vm1303, 1, 0
      %v1328 = vsel %vm1304, 1, 0
      %v1329 = vsel %vm1305, 1, 0
      %v1330 = vsel %vm1306, 1, 0
      %v1331 = vsel %vm1307, 1, 0
      %v1332 = vsel %vm1308, 1, 0
      %v1333 = vsel %vm1309, 1, 0
      %v1334 = vsel %vm1310, 1, 0
      %v1335 = vsel %vm1311, 1, 0
      %v1336 = vsel %vm1312, 1, 0
      %v1337 = vsel %vm1313, 1, 0
      %v1338 = vsel %vm1314, 1, 0
      %v1339 = vsel %vm1315, 1, 0
      %v1340 = vsel %vm1316, 1, 0
      %v1341 = vsel %vm1317, 1, 0
      %v1342 = vsel %vm1318, 1, 0
      %v1343 = vsel %vm1319, 1, 0
      %v1344 = vadd.s32 %v1263, %v1320
      %v1345 = vadd.s32 %v1264, %v1321
      %v1346 = vadd.s32 %v1265, %v1322
      %v1347 = vadd.s32 %v1266, %v1323
      %v1348 = vadd.s32 %v1267, %v1324
      %v1349 = vadd.s32 %v1268, %v1325
      %v1350 = vadd.s32 %v1269, %v1326
      %v1351 = vadd.s32 %v1270, %v1327
      %v1352 = vadd.s32 %v1271, %v1328
      %v1353 = vadd.s32 %v1272, %v1329
      %v1354 = vadd.s32 %v1273, %v1330
      %v1355 = vadd.s32 %v1274, %v1331
      %v1356 = vadd.s32 %v1275, %v1332
      %v1357 = vadd.s32 %v1276, %v1333
      %v1358 = vadd.s32 %v1277, %v1334
      %v1359 = vadd.s32 %v1278, %v1335
      %v1360 = vadd.s32 %v1279, %v1336
      %v1361 = vadd.s32 %v1280, %v1337
      %v1362 = vadd.s32 %v1281, %v1338
      %v1363 = vadd.s32 %v1282, %v1339
      %v1364 = vadd.s32 %v1283, %v1340
      %v1365 = vadd.s32 %v1284, %v1341
      %v1366 = vadd.s32 %v1285, %v1342
      %v1367 = vadd.s32 %v1286, %v1343
      %1368 = vset.pattern.permute.xlu0 6
      %1369 = vperm.xlu0 %1368, %v894
      %v1370 = vpop.permute.xlu0 %1369
      %1371 = vset.pattern.permute.xlu0 6
      %1372 = vperm.xlu0 %1371, %v895
      %v1373 = vpop.permute.xlu0 %1372
      %1374 = vset.pattern.permute.xlu0 6
      %1375 = vperm.xlu0 %1374, %v896
      %v1376 = vpop.permute.xlu0 %1375
      %vm1377 = vcmp.eq.s32.totalorder %v898, %v1370
      %vm1378 = vcmp.eq.s32.totalorder %v899, %v1370
      %vm1379 = vcmp.eq.s32.totalorder %v900, %v1370
      %vm1380 = vcmp.eq.s32.totalorder %v901, %v1370
      %vm1381 = vcmp.eq.s32.totalorder %v902, %v1370
      %vm1382 = vcmp.eq.s32.totalorder %v903, %v1370
      %vm1383 = vcmp.eq.s32.totalorder %v904, %v1370
      %vm1384 = vcmp.eq.s32.totalorder %v905, %v1370
      %vm1385 = vcmp.eq.s32.totalorder %v898, %v1373
      %vm1386 = vcmp.eq.s32.totalorder %v899, %v1373
      %vm1387 = vcmp.eq.s32.totalorder %v900, %v1373
      %vm1388 = vcmp.eq.s32.totalorder %v901, %v1373
      %vm1389 = vcmp.eq.s32.totalorder %v902, %v1373
      %vm1390 = vcmp.eq.s32.totalorder %v903, %v1373
      %vm1391 = vcmp.eq.s32.totalorder %v904, %v1373
      %vm1392 = vcmp.eq.s32.totalorder %v905, %v1373
      %vm1393 = vcmp.eq.s32.totalorder %v898, %v1376
      %vm1394 = vcmp.eq.s32.totalorder %v899, %v1376
      %vm1395 = vcmp.eq.s32.totalorder %v900, %v1376
      %vm1396 = vcmp.eq.s32.totalorder %v901, %v1376
      %vm1397 = vcmp.eq.s32.totalorder %v902, %v1376
      %vm1398 = vcmp.eq.s32.totalorder %v903, %v1376
      %vm1399 = vcmp.eq.s32.totalorder %v904, %v1376
      %vm1400 = vcmp.eq.s32.totalorder %v905, %v1376
      %v1401 = vsel %vm1377, 1, 0
      %v1402 = vsel %vm1378, 1, 0
      %v1403 = vsel %vm1379, 1, 0
      %v1404 = vsel %vm1380, 1, 0
      %v1405 = vsel %vm1381, 1, 0
      %v1406 = vsel %vm1382, 1, 0
      %v1407 = vsel %vm1383, 1, 0
      %v1408 = vsel %vm1384, 1, 0
      %v1409 = vsel %vm1385, 1, 0
      %v1410 = vsel %vm1386, 1, 0
      %v1411 = vsel %vm1387, 1, 0
      %v1412 = vsel %vm1388, 1, 0
      %v1413 = vsel %vm1389, 1, 0
      %v1414 = vsel %vm1390, 1, 0
      %v1415 = vsel %vm1391, 1, 0
      %v1416 = vsel %vm1392, 1, 0
      %v1417 = vsel %vm1393, 1, 0
      %v1418 = vsel %vm1394, 1, 0
      %v1419 = vsel %vm1395, 1, 0
      %v1420 = vsel %vm1396, 1, 0
      %v1421 = vsel %vm1397, 1, 0
      %v1422 = vsel %vm1398, 1, 0
      %v1423 = vsel %vm1399, 1, 0
      %v1424 = vsel %vm1400, 1, 0
      %v1425 = vadd.s32 %v1344, %v1401
      %v1426 = vadd.s32 %v1345, %v1402
      %v1427 = vadd.s32 %v1346, %v1403
      %v1428 = vadd.s32 %v1347, %v1404
      %v1429 = vadd.s32 %v1348, %v1405
      %v1430 = vadd.s32 %v1349, %v1406
      %v1431 = vadd.s32 %v1350, %v1407
      %v1432 = vadd.s32 %v1351, %v1408
      %v1433 = vadd.s32 %v1352, %v1409
      %v1434 = vadd.s32 %v1353, %v1410
      %v1435 = vadd.s32 %v1354, %v1411
      %v1436 = vadd.s32 %v1355, %v1412
      %v1437 = vadd.s32 %v1356, %v1413
      %v1438 = vadd.s32 %v1357, %v1414
      %v1439 = vadd.s32 %v1358, %v1415
      %v1440 = vadd.s32 %v1359, %v1416
      %v1441 = vadd.s32 %v1360, %v1417
      %v1442 = vadd.s32 %v1361, %v1418
      %v1443 = vadd.s32 %v1362, %v1419
      %v1444 = vadd.s32 %v1363, %v1420
      %v1445 = vadd.s32 %v1364, %v1421
      %v1446 = vadd.s32 %v1365, %v1422
      %v1447 = vadd.s32 %v1366, %v1423
      %v1448 = vadd.s32 %v1367, %v1424
      %1449 = vset.pattern.permute.xlu0 7
      %1450 = vperm.xlu0 %1449, %v894
      %v1451 = vpop.permute.xlu0 %1450
      %1452 = vset.pattern.permute.xlu0 7
      %1453 = vperm.xlu0 %1452, %v895
      %v1454 = vpop.permute.xlu0 %1453
      %1455 = vset.pattern.permute.xlu0 7
      %1456 = vperm.xlu0 %1455, %v896
      %v1457 = vpop.permute.xlu0 %1456
      %vm1458 = vcmp.eq.s32.totalorder %v898, %v1451
      %vm1459 = vcmp.eq.s32.totalorder %v899, %v1451
      %vm1460 = vcmp.eq.s32.totalorder %v900, %v1451
      %vm1461 = vcmp.eq.s32.totalorder %v901, %v1451
      %vm1462 = vcmp.eq.s32.totalorder %v902, %v1451
      %vm1463 = vcmp.eq.s32.totalorder %v903, %v1451
      %vm1464 = vcmp.eq.s32.totalorder %v904, %v1451
      %vm1465 = vcmp.eq.s32.totalorder %v905, %v1451
      %vm1466 = vcmp.eq.s32.totalorder %v898, %v1454
      %vm1467 = vcmp.eq.s32.totalorder %v899, %v1454
      %vm1468 = vcmp.eq.s32.totalorder %v900, %v1454
      %vm1469 = vcmp.eq.s32.totalorder %v901, %v1454
      %vm1470 = vcmp.eq.s32.totalorder %v902, %v1454
      %vm1471 = vcmp.eq.s32.totalorder %v903, %v1454
      %vm1472 = vcmp.eq.s32.totalorder %v904, %v1454
      %vm1473 = vcmp.eq.s32.totalorder %v905, %v1454
      %vm1474 = vcmp.eq.s32.totalorder %v898, %v1457
      %vm1475 = vcmp.eq.s32.totalorder %v899, %v1457
      %vm1476 = vcmp.eq.s32.totalorder %v900, %v1457
      %vm1477 = vcmp.eq.s32.totalorder %v901, %v1457
      %vm1478 = vcmp.eq.s32.totalorder %v902, %v1457
      %vm1479 = vcmp.eq.s32.totalorder %v903, %v1457
      %vm1480 = vcmp.eq.s32.totalorder %v904, %v1457
      %vm1481 = vcmp.eq.s32.totalorder %v905, %v1457
      %v1482 = vsel %vm1458, 1, 0
      %v1483 = vsel %vm1459, 1, 0
      %v1484 = vsel %vm1460, 1, 0
      %v1485 = vsel %vm1461, 1, 0
      %v1486 = vsel %vm1462, 1, 0
      %v1487 = vsel %vm1463, 1, 0
      %v1488 = vsel %vm1464, 1, 0
      %v1489 = vsel %vm1465, 1, 0
      %v1490 = vsel %vm1466, 1, 0
      %v1491 = vsel %vm1467, 1, 0
      %v1492 = vsel %vm1468, 1, 0
      %v1493 = vsel %vm1469, 1, 0
      %v1494 = vsel %vm1470, 1, 0
      %v1495 = vsel %vm1471, 1, 0
      %v1496 = vsel %vm1472, 1, 0
      %v1497 = vsel %vm1473, 1, 0
      %v1498 = vsel %vm1474, 1, 0
      %v1499 = vsel %vm1475, 1, 0
      %v1500 = vsel %vm1476, 1, 0
      %v1501 = vsel %vm1477, 1, 0
      %v1502 = vsel %vm1478, 1, 0
      %v1503 = vsel %vm1479, 1, 0
      %v1504 = vsel %vm1480, 1, 0
      %v1505 = vsel %vm1481, 1, 0
      %v1506 = vadd.s32 %v1425, %v1482
      %v1507 = vadd.s32 %v1426, %v1483
      %v1508 = vadd.s32 %v1427, %v1484
      %v1509 = vadd.s32 %v1428, %v1485
      %v1510 = vadd.s32 %v1429, %v1486
      %v1511 = vadd.s32 %v1430, %v1487
      %v1512 = vadd.s32 %v1431, %v1488
      %v1513 = vadd.s32 %v1432, %v1489
      %v1514 = vadd.s32 %v1433, %v1490
      %v1515 = vadd.s32 %v1434, %v1491
      %v1516 = vadd.s32 %v1435, %v1492
      %v1517 = vadd.s32 %v1436, %v1493
      %v1518 = vadd.s32 %v1437, %v1494
      %v1519 = vadd.s32 %v1438, %v1495
      %v1520 = vadd.s32 %v1439, %v1496
      %v1521 = vadd.s32 %v1440, %v1497
      %v1522 = vadd.s32 %v1441, %v1498
      %v1523 = vadd.s32 %v1442, %v1499
      %v1524 = vadd.s32 %v1443, %v1500
      %v1525 = vadd.s32 %v1444, %v1501
      %v1526 = vadd.s32 %v1445, %v1502
      %v1527 = vadd.s32 %v1446, %v1503
      %v1528 = vadd.s32 %v1447, %v1504
      %v1529 = vadd.s32 %v1448, %v1505
      %1530 = vset.pattern.permute.xlu0 8
      %1531 = vperm.xlu0 %1530, %v894
      %v1532 = vpop.permute.xlu0 %1531
      %1533 = vset.pattern.permute.xlu0 8
      %1534 = vperm.xlu0 %1533, %v895
      %v1535 = vpop.permute.xlu0 %1534
      %1536 = vset.pattern.permute.xlu0 8
      %1537 = vperm.xlu0 %1536, %v896
      %v1538 = vpop.permute.xlu0 %1537
      %vm1539 = vcmp.eq.s32.totalorder %v898, %v1532
      %vm1540 = vcmp.eq.s32.totalorder %v899, %v1532
      %vm1541 = vcmp.eq.s32.totalorder %v900, %v1532
      %vm1542 = vcmp.eq.s32.totalorder %v901, %v1532
      %vm1543 = vcmp.eq.s32.totalorder %v902, %v1532
      %vm1544 = vcmp.eq.s32.totalorder %v903, %v1532
      %vm1545 = vcmp.eq.s32.totalorder %v904, %v1532
      %vm1546 = vcmp.eq.s32.totalorder %v905, %v1532
      %vm1547 = vcmp.eq.s32.totalorder %v898, %v1535
      %vm1548 = vcmp.eq.s32.totalorder %v899, %v1535
      %vm1549 = vcmp.eq.s32.totalorder %v900, %v1535
      %vm1550 = vcmp.eq.s32.totalorder %v901, %v1535
      %vm1551 = vcmp.eq.s32.totalorder %v902, %v1535
      %vm1552 = vcmp.eq.s32.totalorder %v903, %v1535
      %vm1553 = vcmp.eq.s32.totalorder %v904, %v1535
      %vm1554 = vcmp.eq.s32.totalorder %v905, %v1535
      %vm1555 = vcmp.eq.s32.totalorder %v898, %v1538
      %vm1556 = vcmp.eq.s32.totalorder %v899, %v1538
      %vm1557 = vcmp.eq.s32.totalorder %v900, %v1538
      %vm1558 = vcmp.eq.s32.totalorder %v901, %v1538
      %vm1559 = vcmp.eq.s32.totalorder %v902, %v1538
      %vm1560 = vcmp.eq.s32.totalorder %v903, %v1538
      %vm1561 = vcmp.eq.s32.totalorder %v904, %v1538
      %vm1562 = vcmp.eq.s32.totalorder %v905, %v1538
      %v1563 = vsel %vm1539, 1, 0
      %v1564 = vsel %vm1540, 1, 0
      %v1565 = vsel %vm1541, 1, 0
      %v1566 = vsel %vm1542, 1, 0
      %v1567 = vsel %vm1543, 1, 0
      %v1568 = vsel %vm1544, 1, 0
      %v1569 = vsel %vm1545, 1, 0
      %v1570 = vsel %vm1546, 1, 0
      %v1571 = vsel %vm1547, 1, 0
      %v1572 = vsel %vm1548, 1, 0
      %v1573 = vsel %vm1549, 1, 0
      %v1574 = vsel %vm1550, 1, 0
      %v1575 = vsel %vm1551, 1, 0
      %v1576 = vsel %vm1552, 1, 0
      %v1577 = vsel %vm1553, 1, 0
      %v1578 = vsel %vm1554, 1, 0
      %v1579 = vsel %vm1555, 1, 0
      %v1580 = vsel %vm1556, 1, 0
      %v1581 = vsel %vm1557, 1, 0
      %v1582 = vsel %vm1558, 1, 0
      %v1583 = vsel %vm1559, 1, 0
      %v1584 = vsel %vm1560, 1, 0
      %v1585 = vsel %vm1561, 1, 0
      %v1586 = vsel %vm1562, 1, 0
      %v1587 = vadd.s32 %v1506, %v1563
      %v1588 = vadd.s32 %v1507, %v1564
      %v1589 = vadd.s32 %v1508, %v1565
      %v1590 = vadd.s32 %v1509, %v1566
      %v1591 = vadd.s32 %v1510, %v1567
      %v1592 = vadd.s32 %v1511, %v1568
      %v1593 = vadd.s32 %v1512, %v1569
      %v1594 = vadd.s32 %v1513, %v1570
      %v1595 = vadd.s32 %v1514, %v1571
      %v1596 = vadd.s32 %v1515, %v1572
      %v1597 = vadd.s32 %v1516, %v1573
      %v1598 = vadd.s32 %v1517, %v1574
      %v1599 = vadd.s32 %v1518, %v1575
      %v1600 = vadd.s32 %v1519, %v1576
      %v1601 = vadd.s32 %v1520, %v1577
      %v1602 = vadd.s32 %v1521, %v1578
      %v1603 = vadd.s32 %v1522, %v1579
      %v1604 = vadd.s32 %v1523, %v1580
      %v1605 = vadd.s32 %v1524, %v1581
      %v1606 = vadd.s32 %v1525, %v1582
      %v1607 = vadd.s32 %v1526, %v1583
      %v1608 = vadd.s32 %v1527, %v1584
      %v1609 = vadd.s32 %v1528, %v1585
      %v1610 = vadd.s32 %v1529, %v1586
      %1611 = vset.pattern.permute.xlu0 9
      %1612 = vperm.xlu0 %1611, %v894
      %v1613 = vpop.permute.xlu0 %1612
      %1614 = vset.pattern.permute.xlu0 9
      %1615 = vperm.xlu0 %1614, %v895
      %v1616 = vpop.permute.xlu0 %1615
      %1617 = vset.pattern.permute.xlu0 9
      %1618 = vperm.xlu0 %1617, %v896
      %v1619 = vpop.permute.xlu0 %1618
      %vm1620 = vcmp.eq.s32.totalorder %v898, %v1613
      %vm1621 = vcmp.eq.s32.totalorder %v899, %v1613
      %vm1622 = vcmp.eq.s32.totalorder %v900, %v1613
      %vm1623 = vcmp.eq.s32.totalorder %v901, %v1613
      %vm1624 = vcmp.eq.s32.totalorder %v902, %v1613
      %vm1625 = vcmp.eq.s32.totalorder %v903, %v1613
      %vm1626 = vcmp.eq.s32.totalorder %v904, %v1613
      %vm1627 = vcmp.eq.s32.totalorder %v905, %v1613
      %vm1628 = vcmp.eq.s32.totalorder %v898, %v1616
      %vm1629 = vcmp.eq.s32.totalorder %v899, %v1616
      %vm1630 = vcmp.eq.s32.totalorder %v900, %v1616
      %vm1631 = vcmp.eq.s32.totalorder %v901, %v1616
      %vm1632 = vcmp.eq.s32.totalorder %v902, %v1616
      %vm1633 = vcmp.eq.s32.totalorder %v903, %v1616
      %vm1634 = vcmp.eq.s32.totalorder %v904, %v1616
      %vm1635 = vcmp.eq.s32.totalorder %v905, %v1616
      %vm1636 = vcmp.eq.s32.totalorder %v898, %v1619
      %vm1637 = vcmp.eq.s32.totalorder %v899, %v1619
      %vm1638 = vcmp.eq.s32.totalorder %v900, %v1619
      %vm1639 = vcmp.eq.s32.totalorder %v901, %v1619
      %vm1640 = vcmp.eq.s32.totalorder %v902, %v1619
      %vm1641 = vcmp.eq.s32.totalorder %v903, %v1619
      %vm1642 = vcmp.eq.s32.totalorder %v904, %v1619
      %vm1643 = vcmp.eq.s32.totalorder %v905, %v1619
      %v1644 = vsel %vm1620, 1, 0
      %v1645 = vsel %vm1621, 1, 0
      %v1646 = vsel %vm1622, 1, 0
      %v1647 = vsel %vm1623, 1, 0
      %v1648 = vsel %vm1624, 1, 0
      %v1649 = vsel %vm1625, 1, 0
      %v1650 = vsel %vm1626, 1, 0
      %v1651 = vsel %vm1627, 1, 0
      %v1652 = vsel %vm1628, 1, 0
      %v1653 = vsel %vm1629, 1, 0
      %v1654 = vsel %vm1630, 1, 0
      %v1655 = vsel %vm1631, 1, 0
      %v1656 = vsel %vm1632, 1, 0
      %v1657 = vsel %vm1633, 1, 0
      %v1658 = vsel %vm1634, 1, 0
      %v1659 = vsel %vm1635, 1, 0
      %v1660 = vsel %vm1636, 1, 0
      %v1661 = vsel %vm1637, 1, 0
      %v1662 = vsel %vm1638, 1, 0
      %v1663 = vsel %vm1639, 1, 0
      %v1664 = vsel %vm1640, 1, 0
      %v1665 = vsel %vm1641, 1, 0
      %v1666 = vsel %vm1642, 1, 0
      %v1667 = vsel %vm1643, 1, 0
      %v1668 = vadd.s32 %v1587, %v1644
      %v1669 = vadd.s32 %v1588, %v1645
      %v1670 = vadd.s32 %v1589, %v1646
      %v1671 = vadd.s32 %v1590, %v1647
      %v1672 = vadd.s32 %v1591, %v1648
      %v1673 = vadd.s32 %v1592, %v1649
      %v1674 = vadd.s32 %v1593, %v1650
      %v1675 = vadd.s32 %v1594, %v1651
      %v1676 = vadd.s32 %v1595, %v1652
      %v1677 = vadd.s32 %v1596, %v1653
      %v1678 = vadd.s32 %v1597, %v1654
      %v1679 = vadd.s32 %v1598, %v1655
      %v1680 = vadd.s32 %v1599, %v1656
      %v1681 = vadd.s32 %v1600, %v1657
      %v1682 = vadd.s32 %v1601, %v1658
      %v1683 = vadd.s32 %v1602, %v1659
      %v1684 = vadd.s32 %v1603, %v1660
      %v1685 = vadd.s32 %v1604, %v1661
      %v1686 = vadd.s32 %v1605, %v1662
      %v1687 = vadd.s32 %v1606, %v1663
      %v1688 = vadd.s32 %v1607, %v1664
      %v1689 = vadd.s32 %v1608, %v1665
      %v1690 = vadd.s32 %v1609, %v1666
      %v1691 = vadd.s32 %v1610, %v1667
      %1692 = vset.pattern.permute.xlu0 10
      %1693 = vperm.xlu0 %1692, %v894
      %v1694 = vpop.permute.xlu0 %1693
      %1695 = vset.pattern.permute.xlu0 10
      %1696 = vperm.xlu0 %1695, %v895
      %v1697 = vpop.permute.xlu0 %1696
      %1698 = vset.pattern.permute.xlu0 10
      %1699 = vperm.xlu0 %1698, %v896
      %v1700 = vpop.permute.xlu0 %1699
      %vm1701 = vcmp.eq.s32.totalorder %v898, %v1694
      %vm1702 = vcmp.eq.s32.totalorder %v899, %v1694
      %vm1703 = vcmp.eq.s32.totalorder %v900, %v1694
      %vm1704 = vcmp.eq.s32.totalorder %v901, %v1694
      %vm1705 = vcmp.eq.s32.totalorder %v902, %v1694
      %vm1706 = vcmp.eq.s32.totalorder %v903, %v1694
      %vm1707 = vcmp.eq.s32.totalorder %v904, %v1694
      %vm1708 = vcmp.eq.s32.totalorder %v905, %v1694
      %vm1709 = vcmp.eq.s32.totalorder %v898, %v1697
      %vm1710 = vcmp.eq.s32.totalorder %v899, %v1697
      %vm1711 = vcmp.eq.s32.totalorder %v900, %v1697
      %vm1712 = vcmp.eq.s32.totalorder %v901, %v1697
      %vm1713 = vcmp.eq.s32.totalorder %v902, %v1697
      %vm1714 = vcmp.eq.s32.totalorder %v903, %v1697
      %vm1715 = vcmp.eq.s32.totalorder %v904, %v1697
      %vm1716 = vcmp.eq.s32.totalorder %v905, %v1697
      %vm1717 = vcmp.eq.s32.totalorder %v898, %v1700
      %vm1718 = vcmp.eq.s32.totalorder %v899, %v1700
      %vm1719 = vcmp.eq.s32.totalorder %v900, %v1700
      %vm1720 = vcmp.eq.s32.totalorder %v901, %v1700
      %vm1721 = vcmp.eq.s32.totalorder %v902, %v1700
      %vm1722 = vcmp.eq.s32.totalorder %v903, %v1700
      %vm1723 = vcmp.eq.s32.totalorder %v904, %v1700
      %vm1724 = vcmp.eq.s32.totalorder %v905, %v1700
      %v1725 = vsel %vm1701, 1, 0
      %v1726 = vsel %vm1702, 1, 0
      %v1727 = vsel %vm1703, 1, 0
      %v1728 = vsel %vm1704, 1, 0
      %v1729 = vsel %vm1705, 1, 0
      %v1730 = vsel %vm1706, 1, 0
      %v1731 = vsel %vm1707, 1, 0
      %v1732 = vsel %vm1708, 1, 0
      %v1733 = vsel %vm1709, 1, 0
      %v1734 = vsel %vm1710, 1, 0
      %v1735 = vsel %vm1711, 1, 0
      %v1736 = vsel %vm1712, 1, 0
      %v1737 = vsel %vm1713, 1, 0
      %v1738 = vsel %vm1714, 1, 0
      %v1739 = vsel %vm1715, 1, 0
      %v1740 = vsel %vm1716, 1, 0
      %v1741 = vsel %vm1717, 1, 0
      %v1742 = vsel %vm1718, 1, 0
      %v1743 = vsel %vm1719, 1, 0
      %v1744 = vsel %vm1720, 1, 0
      %v1745 = vsel %vm1721, 1, 0
      %v1746 = vsel %vm1722, 1, 0
      %v1747 = vsel %vm1723, 1, 0
      %v1748 = vsel %vm1724, 1, 0
      %v1749 = vadd.s32 %v1668, %v1725
      %v1750 = vadd.s32 %v1669, %v1726
      %v1751 = vadd.s32 %v1670, %v1727
      %v1752 = vadd.s32 %v1671, %v1728
      %v1753 = vadd.s32 %v1672, %v1729
      %v1754 = vadd.s32 %v1673, %v1730
      %v1755 = vadd.s32 %v1674, %v1731
      %v1756 = vadd.s32 %v1675, %v1732
      %v1757 = vadd.s32 %v1676, %v1733
      %v1758 = vadd.s32 %v1677, %v1734
      %v1759 = vadd.s32 %v1678, %v1735
      %v1760 = vadd.s32 %v1679, %v1736
      %v1761 = vadd.s32 %v1680, %v1737
      %v1762 = vadd.s32 %v1681, %v1738
      %v1763 = vadd.s32 %v1682, %v1739
      %v1764 = vadd.s32 %v1683, %v1740
      %v1765 = vadd.s32 %v1684, %v1741
      %v1766 = vadd.s32 %v1685, %v1742
      %v1767 = vadd.s32 %v1686, %v1743
      %v1768 = vadd.s32 %v1687, %v1744
      %v1769 = vadd.s32 %v1688, %v1745
      %v1770 = vadd.s32 %v1689, %v1746
      %v1771 = vadd.s32 %v1690, %v1747
      %v1772 = vadd.s32 %v1691, %v1748
      %1773 = vset.pattern.permute.xlu0 11
      %1774 = vperm.xlu0 %1773, %v894
      %v1775 = vpop.permute.xlu0 %1774
      %1776 = vset.pattern.permute.xlu0 11
      %1777 = vperm.xlu0 %1776, %v895
      %v1778 = vpop.permute.xlu0 %1777
      %1779 = vset.pattern.permute.xlu0 11
      %1780 = vperm.xlu0 %1779, %v896
      %v1781 = vpop.permute.xlu0 %1780
      %vm1782 = vcmp.eq.s32.totalorder %v898, %v1775
      %vm1783 = vcmp.eq.s32.totalorder %v899, %v1775
      %vm1784 = vcmp.eq.s32.totalorder %v900, %v1775
      %vm1785 = vcmp.eq.s32.totalorder %v901, %v1775
      %vm1786 = vcmp.eq.s32.totalorder %v902, %v1775
      %vm1787 = vcmp.eq.s32.totalorder %v903, %v1775
      %vm1788 = vcmp.eq.s32.totalorder %v904, %v1775
      %vm1789 = vcmp.eq.s32.totalorder %v905, %v1775
      %vm1790 = vcmp.eq.s32.totalorder %v898, %v1778
      %vm1791 = vcmp.eq.s32.totalorder %v899, %v1778
      %vm1792 = vcmp.eq.s32.totalorder %v900, %v1778
      %vm1793 = vcmp.eq.s32.totalorder %v901, %v1778
      %vm1794 = vcmp.eq.s32.totalorder %v902, %v1778
      %vm1795 = vcmp.eq.s32.totalorder %v903, %v1778
      %vm1796 = vcmp.eq.s32.totalorder %v904, %v1778
      %vm1797 = vcmp.eq.s32.totalorder %v905, %v1778
      %vm1798 = vcmp.eq.s32.totalorder %v898, %v1781
      %vm1799 = vcmp.eq.s32.totalorder %v899, %v1781
      %vm1800 = vcmp.eq.s32.totalorder %v900, %v1781
      %vm1801 = vcmp.eq.s32.totalorder %v901, %v1781
      %vm1802 = vcmp.eq.s32.totalorder %v902, %v1781
      %vm1803 = vcmp.eq.s32.totalorder %v903, %v1781
      %vm1804 = vcmp.eq.s32.totalorder %v904, %v1781
      %vm1805 = vcmp.eq.s32.totalorder %v905, %v1781
      %v1806 = vsel %vm1782, 1, 0
      %v1807 = vsel %vm1783, 1, 0
      %v1808 = vsel %vm1784, 1, 0
      %v1809 = vsel %vm1785, 1, 0
      %v1810 = vsel %vm1786, 1, 0
      %v1811 = vsel %vm1787, 1, 0
      %v1812 = vsel %vm1788, 1, 0
      %v1813 = vsel %vm1789, 1, 0
      %v1814 = vsel %vm1790, 1, 0
      %v1815 = vsel %vm1791, 1, 0
      %v1816 = vsel %vm1792, 1, 0
      %v1817 = vsel %vm1793, 1, 0
      %v1818 = vsel %vm1794, 1, 0
      %v1819 = vsel %vm1795, 1, 0
      %v1820 = vsel %vm1796, 1, 0
      %v1821 = vsel %vm1797, 1, 0
      %v1822 = vsel %vm1798, 1, 0
      %v1823 = vsel %vm1799, 1, 0
      %v1824 = vsel %vm1800, 1, 0
      %v1825 = vsel %vm1801, 1, 0
      %v1826 = vsel %vm1802, 1, 0
      %v1827 = vsel %vm1803, 1, 0
      %v1828 = vsel %vm1804, 1, 0
      %v1829 = vsel %vm1805, 1, 0
      %v1830 = vadd.s32 %v1749, %v1806
      %v1831 = vadd.s32 %v1750, %v1807
      %v1832 = vadd.s32 %v1751, %v1808
      %v1833 = vadd.s32 %v1752, %v1809
      %v1834 = vadd.s32 %v1753, %v1810
      %v1835 = vadd.s32 %v1754, %v1811
      %v1836 = vadd.s32 %v1755, %v1812
      %v1837 = vadd.s32 %v1756, %v1813
      %v1838 = vadd.s32 %v1757, %v1814
      %v1839 = vadd.s32 %v1758, %v1815
      %v1840 = vadd.s32 %v1759, %v1816
      %v1841 = vadd.s32 %v1760, %v1817
      %v1842 = vadd.s32 %v1761, %v1818
      %v1843 = vadd.s32 %v1762, %v1819
      %v1844 = vadd.s32 %v1763, %v1820
      %v1845 = vadd.s32 %v1764, %v1821
      %v1846 = vadd.s32 %v1765, %v1822
      %v1847 = vadd.s32 %v1766, %v1823
      %v1848 = vadd.s32 %v1767, %v1824
      %v1849 = vadd.s32 %v1768, %v1825
      %v1850 = vadd.s32 %v1769, %v1826
      %v1851 = vadd.s32 %v1770, %v1827
      %v1852 = vadd.s32 %v1771, %v1828
      %v1853 = vadd.s32 %v1772, %v1829
      %1854 = vset.pattern.permute.xlu0 12
      %1855 = vperm.xlu0 %1854, %v894
      %v1856 = vpop.permute.xlu0 %1855
      %1857 = vset.pattern.permute.xlu0 12
      %1858 = vperm.xlu0 %1857, %v895
      %v1859 = vpop.permute.xlu0 %1858
      %1860 = vset.pattern.permute.xlu0 12
      %1861 = vperm.xlu0 %1860, %v896
      %v1862 = vpop.permute.xlu0 %1861
      %vm1863 = vcmp.eq.s32.totalorder %v898, %v1856
      %vm1864 = vcmp.eq.s32.totalorder %v899, %v1856
      %vm1865 = vcmp.eq.s32.totalorder %v900, %v1856
      %vm1866 = vcmp.eq.s32.totalorder %v901, %v1856
      %vm1867 = vcmp.eq.s32.totalorder %v902, %v1856
      %vm1868 = vcmp.eq.s32.totalorder %v903, %v1856
      %vm1869 = vcmp.eq.s32.totalorder %v904, %v1856
      %vm1870 = vcmp.eq.s32.totalorder %v905, %v1856
      %vm1871 = vcmp.eq.s32.totalorder %v898, %v1859
      %vm1872 = vcmp.eq.s32.totalorder %v899, %v1859
      %vm1873 = vcmp.eq.s32.totalorder %v900, %v1859
      %vm1874 = vcmp.eq.s32.totalorder %v901, %v1859
      %vm1875 = vcmp.eq.s32.totalorder %v902, %v1859
      %vm1876 = vcmp.eq.s32.totalorder %v903, %v1859
      %vm1877 = vcmp.eq.s32.totalorder %v904, %v1859
      %vm1878 = vcmp.eq.s32.totalorder %v905, %v1859
      %vm1879 = vcmp.eq.s32.totalorder %v898, %v1862
      %vm1880 = vcmp.eq.s32.totalorder %v899, %v1862
      %vm1881 = vcmp.eq.s32.totalorder %v900, %v1862
      %vm1882 = vcmp.eq.s32.totalorder %v901, %v1862
      %vm1883 = vcmp.eq.s32.totalorder %v902, %v1862
      %vm1884 = vcmp.eq.s32.totalorder %v903, %v1862
      %vm1885 = vcmp.eq.s32.totalorder %v904, %v1862
      %vm1886 = vcmp.eq.s32.totalorder %v905, %v1862
      %v1887 = vsel %vm1863, 1, 0
      %v1888 = vsel %vm1864, 1, 0
      %v1889 = vsel %vm1865, 1, 0
      %v1890 = vsel %vm1866, 1, 0
      %v1891 = vsel %vm1867, 1, 0
      %v1892 = vsel %vm1868, 1, 0
      %v1893 = vsel %vm1869, 1, 0
      %v1894 = vsel %vm1870, 1, 0
      %v1895 = vsel %vm1871, 1, 0
      %v1896 = vsel %vm1872, 1, 0
      %v1897 = vsel %vm1873, 1, 0
      %v1898 = vsel %vm1874, 1, 0
      %v1899 = vsel %vm1875, 1, 0
      %v1900 = vsel %vm1876, 1, 0
      %v1901 = vsel %vm1877, 1, 0
      %v1902 = vsel %vm1878, 1, 0
      %v1903 = vsel %vm1879, 1, 0
      %v1904 = vsel %vm1880, 1, 0
      %v1905 = vsel %vm1881, 1, 0
      %v1906 = vsel %vm1882, 1, 0
      %v1907 = vsel %vm1883, 1, 0
      %v1908 = vsel %vm1884, 1, 0
      %v1909 = vsel %vm1885, 1, 0
      %v1910 = vsel %vm1886, 1, 0
      %v1911 = vadd.s32 %v1830, %v1887
      %v1912 = vadd.s32 %v1831, %v1888
      %v1913 = vadd.s32 %v1832, %v1889
      %v1914 = vadd.s32 %v1833, %v1890
      %v1915 = vadd.s32 %v1834, %v1891
      %v1916 = vadd.s32 %v1835, %v1892
      %v1917 = vadd.s32 %v1836, %v1893
      %v1918 = vadd.s32 %v1837, %v1894
      %v1919 = vadd.s32 %v1838, %v1895
      %v1920 = vadd.s32 %v1839, %v1896
      %v1921 = vadd.s32 %v1840, %v1897
      %v1922 = vadd.s32 %v1841, %v1898
      %v1923 = vadd.s32 %v1842, %v1899
      %v1924 = vadd.s32 %v1843, %v1900
      %v1925 = vadd.s32 %v1844, %v1901
      %v1926 = vadd.s32 %v1845, %v1902
      %v1927 = vadd.s32 %v1846, %v1903
      %v1928 = vadd.s32 %v1847, %v1904
      %v1929 = vadd.s32 %v1848, %v1905
      %v1930 = vadd.s32 %v1849, %v1906
      %v1931 = vadd.s32 %v1850, %v1907
      %v1932 = vadd.s32 %v1851, %v1908
      %v1933 = vadd.s32 %v1852, %v1909
      %v1934 = vadd.s32 %v1853, %v1910
      %1935 = vset.pattern.permute.xlu0 13
      %1936 = vperm.xlu0 %1935, %v894
      %v1937 = vpop.permute.xlu0 %1936
      %1938 = vset.pattern.permute.xlu0 13
      %1939 = vperm.xlu0 %1938, %v895
      %v1940 = vpop.permute.xlu0 %1939
      %1941 = vset.pattern.permute.xlu0 13
      %1942 = vperm.xlu0 %1941, %v896
      %v1943 = vpop.permute.xlu0 %1942
      %vm1944 = vcmp.eq.s32.totalorder %v898, %v1937
      %vm1945 = vcmp.eq.s32.totalorder %v899, %v1937
      %vm1946 = vcmp.eq.s32.totalorder %v900, %v1937
      %vm1947 = vcmp.eq.s32.totalorder %v901, %v1937
      %vm1948 = vcmp.eq.s32.totalorder %v902, %v1937
      %vm1949 = vcmp.eq.s32.totalorder %v903, %v1937
      %vm1950 = vcmp.eq.s32.totalorder %v904, %v1937
      %vm1951 = vcmp.eq.s32.totalorder %v905, %v1937
      %vm1952 = vcmp.eq.s32.totalorder %v898, %v1940
      %vm1953 = vcmp.eq.s32.totalorder %v899, %v1940
      %vm1954 = vcmp.eq.s32.totalorder %v900, %v1940
      %vm1955 = vcmp.eq.s32.totalorder %v901, %v1940
      %vm1956 = vcmp.eq.s32.totalorder %v902, %v1940
      %vm1957 = vcmp.eq.s32.totalorder %v903, %v1940
      %vm1958 = vcmp.eq.s32.totalorder %v904, %v1940
      %vm1959 = vcmp.eq.s32.totalorder %v905, %v1940
      %vm1960 = vcmp.eq.s32.totalorder %v898, %v1943
      %vm1961 = vcmp.eq.s32.totalorder %v899, %v1943
      %vm1962 = vcmp.eq.s32.totalorder %v900, %v1943
      %vm1963 = vcmp.eq.s32.totalorder %v901, %v1943
      %vm1964 = vcmp.eq.s32.totalorder %v902, %v1943
      %vm1965 = vcmp.eq.s32.totalorder %v903, %v1943
      %vm1966 = vcmp.eq.s32.totalorder %v904, %v1943
      %vm1967 = vcmp.eq.s32.totalorder %v905, %v1943
      %v1968 = vsel %vm1944, 1, 0
      %v1969 = vsel %vm1945, 1, 0
      %v1970 = vsel %vm1946, 1, 0
      %v1971 = vsel %vm1947, 1, 0
      %v1972 = vsel %vm1948, 1, 0
      %v1973 = vsel %vm1949, 1, 0
      %v1974 = vsel %vm1950, 1, 0
      %v1975 = vsel %vm1951, 1, 0
      %v1976 = vsel %vm1952, 1, 0
      %v1977 = vsel %vm1953, 1, 0
      %v1978 = vsel %vm1954, 1, 0
      %v1979 = vsel %vm1955, 1, 0
      %v1980 = vsel %vm1956, 1, 0
      %v1981 = vsel %vm1957, 1, 0
      %v1982 = vsel %vm1958, 1, 0
      %v1983 = vsel %vm1959, 1, 0
      %v1984 = vsel %vm1960, 1, 0
      %v1985 = vsel %vm1961, 1, 0
      %v1986 = vsel %vm1962, 1, 0
      %v1987 = vsel %vm1963, 1, 0
      %v1988 = vsel %vm1964, 1, 0
      %v1989 = vsel %vm1965, 1, 0
      %v1990 = vsel %vm1966, 1, 0
      %v1991 = vsel %vm1967, 1, 0
      %v1992 = vadd.s32 %v1911, %v1968
      %v1993 = vadd.s32 %v1912, %v1969
      %v1994 = vadd.s32 %v1913, %v1970
      %v1995 = vadd.s32 %v1914, %v1971
      %v1996 = vadd.s32 %v1915, %v1972
      %v1997 = vadd.s32 %v1916, %v1973
      %v1998 = vadd.s32 %v1917, %v1974
      %v1999 = vadd.s32 %v1918, %v1975
      %v2000 = vadd.s32 %v1919, %v1976
      %v2001 = vadd.s32 %v1920, %v1977
      %v2002 = vadd.s32 %v1921, %v1978
      %v2003 = vadd.s32 %v1922, %v1979
      %v2004 = vadd.s32 %v1923, %v1980
      %v2005 = vadd.s32 %v1924, %v1981
      %v2006 = vadd.s32 %v1925, %v1982
      %v2007 = vadd.s32 %v1926, %v1983
      %v2008 = vadd.s32 %v1927, %v1984
      %v2009 = vadd.s32 %v1928, %v1985
      %v2010 = vadd.s32 %v1929, %v1986
      %v2011 = vadd.s32 %v1930, %v1987
      %v2012 = vadd.s32 %v1931, %v1988
      %v2013 = vadd.s32 %v1932, %v1989
      %v2014 = vadd.s32 %v1933, %v1990
      %v2015 = vadd.s32 %v1934, %v1991
      %2016 = vset.pattern.permute.xlu0 14
      %2017 = vperm.xlu0 %2016, %v894
      %v2018 = vpop.permute.xlu0 %2017
      %2019 = vset.pattern.permute.xlu0 14
      %2020 = vperm.xlu0 %2019, %v895
      %v2021 = vpop.permute.xlu0 %2020
      %2022 = vset.pattern.permute.xlu0 14
      %2023 = vperm.xlu0 %2022, %v896
      %v2024 = vpop.permute.xlu0 %2023
      %vm2025 = vcmp.eq.s32.totalorder %v898, %v2018
      %vm2026 = vcmp.eq.s32.totalorder %v899, %v2018
      %vm2027 = vcmp.eq.s32.totalorder %v900, %v2018
      %vm2028 = vcmp.eq.s32.totalorder %v901, %v2018
      %vm2029 = vcmp.eq.s32.totalorder %v902, %v2018
      %vm2030 = vcmp.eq.s32.totalorder %v903, %v2018
      %vm2031 = vcmp.eq.s32.totalorder %v904, %v2018
      %vm2032 = vcmp.eq.s32.totalorder %v905, %v2018
      %vm2033 = vcmp.eq.s32.totalorder %v898, %v2021
      %vm2034 = vcmp.eq.s32.totalorder %v899, %v2021
      %vm2035 = vcmp.eq.s32.totalorder %v900, %v2021
      %vm2036 = vcmp.eq.s32.totalorder %v901, %v2021
      %vm2037 = vcmp.eq.s32.totalorder %v902, %v2021
      %vm2038 = vcmp.eq.s32.totalorder %v903, %v2021
      %vm2039 = vcmp.eq.s32.totalorder %v904, %v2021
      %vm2040 = vcmp.eq.s32.totalorder %v905, %v2021
      %vm2041 = vcmp.eq.s32.totalorder %v898, %v2024
      %vm2042 = vcmp.eq.s32.totalorder %v899, %v2024
      %vm2043 = vcmp.eq.s32.totalorder %v900, %v2024
      %vm2044 = vcmp.eq.s32.totalorder %v901, %v2024
      %vm2045 = vcmp.eq.s32.totalorder %v902, %v2024
      %vm2046 = vcmp.eq.s32.totalorder %v903, %v2024
      %vm2047 = vcmp.eq.s32.totalorder %v904, %v2024
      %vm2048 = vcmp.eq.s32.totalorder %v905, %v2024
      %v2049 = vsel %vm2025, 1, 0
      %v2050 = vsel %vm2026, 1, 0
      %v2051 = vsel %vm2027, 1, 0
      %v2052 = vsel %vm2028, 1, 0
      %v2053 = vsel %vm2029, 1, 0
      %v2054 = vsel %vm2030, 1, 0
      %v2055 = vsel %vm2031, 1, 0
      %v2056 = vsel %vm2032, 1, 0
      %v2057 = vsel %vm2033, 1, 0
      %v2058 = vsel %vm2034, 1, 0
      %v2059 = vsel %vm2035, 1, 0
      %v2060 = vsel %vm2036, 1, 0
      %v2061 = vsel %vm2037, 1, 0
      %v2062 = vsel %vm2038, 1, 0
      %v2063 = vsel %vm2039, 1, 0
      %v2064 = vsel %vm2040, 1, 0
      %v2065 = vsel %vm2041, 1, 0
      %v2066 = vsel %vm2042, 1, 0
      %v2067 = vsel %vm2043, 1, 0
      %v2068 = vsel %vm2044, 1, 0
      %v2069 = vsel %vm2045, 1, 0
      %v2070 = vsel %vm2046, 1, 0
      %v2071 = vsel %vm2047, 1, 0
      %v2072 = vsel %vm2048, 1, 0
      %v2073 = vadd.s32 %v1992, %v2049
      %v2074 = vadd.s32 %v1993, %v2050
      %v2075 = vadd.s32 %v1994, %v2051
      %v2076 = vadd.s32 %v1995, %v2052
      %v2077 = vadd.s32 %v1996, %v2053
      %v2078 = vadd.s32 %v1997, %v2054
      %v2079 = vadd.s32 %v1998, %v2055
      %v2080 = vadd.s32 %v1999, %v2056
      %v2081 = vadd.s32 %v2000, %v2057
      %v2082 = vadd.s32 %v2001, %v2058
      %v2083 = vadd.s32 %v2002, %v2059
      %v2084 = vadd.s32 %v2003, %v2060
      %v2085 = vadd.s32 %v2004, %v2061
      %v2086 = vadd.s32 %v2005, %v2062
      %v2087 = vadd.s32 %v2006, %v2063
      %v2088 = vadd.s32 %v2007, %v2064
      %v2089 = vadd.s32 %v2008, %v2065
      %v2090 = vadd.s32 %v2009, %v2066
      %v2091 = vadd.s32 %v2010, %v2067
      %v2092 = vadd.s32 %v2011, %v2068
      %v2093 = vadd.s32 %v2012, %v2069
      %v2094 = vadd.s32 %v2013, %v2070
      %v2095 = vadd.s32 %v2014, %v2071
      %v2096 = vadd.s32 %v2015, %v2072
      %2097 = vset.pattern.permute.xlu0 15
      %2098 = vperm.xlu0 %2097, %v894
      %v2099 = vpop.permute.xlu0 %2098
      %2100 = vset.pattern.permute.xlu0 15
      %2101 = vperm.xlu0 %2100, %v895
      %v2102 = vpop.permute.xlu0 %2101
      %2103 = vset.pattern.permute.xlu0 15
      %2104 = vperm.xlu0 %2103, %v896
      %v2105 = vpop.permute.xlu0 %2104
      %vm2106 = vcmp.eq.s32.totalorder %v898, %v2099
      %vm2107 = vcmp.eq.s32.totalorder %v899, %v2099
      %vm2108 = vcmp.eq.s32.totalorder %v900, %v2099
      %vm2109 = vcmp.eq.s32.totalorder %v901, %v2099
      %vm2110 = vcmp.eq.s32.totalorder %v902, %v2099
      %vm2111 = vcmp.eq.s32.totalorder %v903, %v2099
      %vm2112 = vcmp.eq.s32.totalorder %v904, %v2099
      %vm2113 = vcmp.eq.s32.totalorder %v905, %v2099
      %vm2114 = vcmp.eq.s32.totalorder %v898, %v2102
      %vm2115 = vcmp.eq.s32.totalorder %v899, %v2102
      %vm2116 = vcmp.eq.s32.totalorder %v900, %v2102
      %vm2117 = vcmp.eq.s32.totalorder %v901, %v2102
      %vm2118 = vcmp.eq.s32.totalorder %v902, %v2102
      %vm2119 = vcmp.eq.s32.totalorder %v903, %v2102
      %vm2120 = vcmp.eq.s32.totalorder %v904, %v2102
      %vm2121 = vcmp.eq.s32.totalorder %v905, %v2102
      %vm2122 = vcmp.eq.s32.totalorder %v898, %v2105
      %vm2123 = vcmp.eq.s32.totalorder %v899, %v2105
      %vm2124 = vcmp.eq.s32.totalorder %v900, %v2105
      %vm2125 = vcmp.eq.s32.totalorder %v901, %v2105
      %vm2126 = vcmp.eq.s32.totalorder %v902, %v2105
      %vm2127 = vcmp.eq.s32.totalorder %v903, %v2105
      %vm2128 = vcmp.eq.s32.totalorder %v904, %v2105
      %vm2129 = vcmp.eq.s32.totalorder %v905, %v2105
      %v2130 = vsel %vm2106, 1, 0
      %v2131 = vsel %vm2107, 1, 0
      %v2132 = vsel %vm2108, 1, 0
      %v2133 = vsel %vm2109, 1, 0
      %v2134 = vsel %vm2110, 1, 0
      %v2135 = vsel %vm2111, 1, 0
      %v2136 = vsel %vm2112, 1, 0
      %v2137 = vsel %vm2113, 1, 0
      %v2138 = vsel %vm2114, 1, 0
      %v2139 = vsel %vm2115, 1, 0
      %v2140 = vsel %vm2116, 1, 0
      %v2141 = vsel %vm2117, 1, 0
      %v2142 = vsel %vm2118, 1, 0
      %v2143 = vsel %vm2119, 1, 0
      %v2144 = vsel %vm2120, 1, 0
      %v2145 = vsel %vm2121, 1, 0
      %v2146 = vsel %vm2122, 1, 0
      %v2147 = vsel %vm2123, 1, 0
      %v2148 = vsel %vm2124, 1, 0
      %v2149 = vsel %vm2125, 1, 0
      %v2150 = vsel %vm2126, 1, 0
      %v2151 = vsel %vm2127, 1, 0
      %v2152 = vsel %vm2128, 1, 0
      %v2153 = vsel %vm2129, 1, 0
      %v2154 = vadd.s32 %v2073, %v2130
      %v2155 = vadd.s32 %v2074, %v2131
      %v2156 = vadd.s32 %v2075, %v2132
      %v2157 = vadd.s32 %v2076, %v2133
      %v2158 = vadd.s32 %v2077, %v2134
      %v2159 = vadd.s32 %v2078, %v2135
      %v2160 = vadd.s32 %v2079, %v2136
      %v2161 = vadd.s32 %v2080, %v2137
      %v2162 = vadd.s32 %v2081, %v2138
      %v2163 = vadd.s32 %v2082, %v2139
      %v2164 = vadd.s32 %v2083, %v2140
      %v2165 = vadd.s32 %v2084, %v2141
      %v2166 = vadd.s32 %v2085, %v2142
      %v2167 = vadd.s32 %v2086, %v2143
      %v2168 = vadd.s32 %v2087, %v2144
      %v2169 = vadd.s32 %v2088, %v2145
      %v2170 = vadd.s32 %v2089, %v2146
      %v2171 = vadd.s32 %v2090, %v2147
      %v2172 = vadd.s32 %v2091, %v2148
      %v2173 = vadd.s32 %v2092, %v2149
      %v2174 = vadd.s32 %v2093, %v2150
      %v2175 = vadd.s32 %v2094, %v2151
      %v2176 = vadd.s32 %v2095, %v2152
      %v2177 = vadd.s32 %v2096, %v2153
      %v2178 = vld [vmem:[#allocation2] sm:$0xff]
      %v2179 = vld [vmem:[#allocation2 + $0x8] sm:$0xff]
      %v2180 = vld [vmem:[#allocation2 + $0x10] sm:$0xff]
      %v2181 = vcvt.s32.f32 %v2154
      %v2182 = vcvt.s32.f32 %v2155
      %v2183 = vcvt.s32.f32 %v2156
      %v2184 = vcvt.s32.f32 %v2157
      %v2185 = vcvt.s32.f32 %v2158
      %v2186 = vcvt.s32.f32 %v2159
      %v2187 = vcvt.s32.f32 %v2160
      %v2188 = vcvt.s32.f32 %v2161
      %v2189 = vcvt.s32.f32 %v2162
      %v2190 = vcvt.s32.f32 %v2163
      %v2191 = vcvt.s32.f32 %v2164
      %v2192 = vcvt.s32.f32 %v2165
      %v2193 = vcvt.s32.f32 %v2166
      %v2194 = vcvt.s32.f32 %v2167
      %v2195 = vcvt.s32.f32 %v2168
      %v2196 = vcvt.s32.f32 %v2169
      %v2197 = vcvt.s32.f32 %v2170
      %v2198 = vcvt.s32.f32 %v2171
      %v2199 = vcvt.s32.f32 %v2172
      %v2200 = vcvt.s32.f32 %v2173
      %v2201 = vcvt.s32.f32 %v2174
      %v2202 = vcvt.s32.f32 %v2175
      %v2203 = vcvt.s32.f32 %v2176
      %v2204 = vcvt.s32.f32 %v2177
      %v2333 = vperm.slane %v507, %v898
      %v2334 = vadd.s32 %v898, 4294967288
      %v2335 = vperm.slane %v510, %v2334
      %vm2336 = vcmask 130112
      %v2337 = vsel %vm2336, %v2335, %v2333
      %v2338 = vadd.s32 %v898, 4294967280
      %v2339 = vperm.slane %v513, %v2338
      %vm2340 = vcmask 195712
      %v2341 = vsel %vm2340, %v2339, %v2337
      %v2342 = vadd.s32 %v898, 4294967272
      %v2343 = vperm.slane %v516, %v2342
      %vm2344 = vcmask 261312
      %v2345 = vsel %vm2344, %v2343, %v2341
      %v2346 = vadd.s32 %v898, 4294967264
      %v2347 = vperm.slane %v519, %v2346
      %vm2348 = vcmask 326912
      %v2349 = vsel %vm2348, %v2347, %v2345
      %v2350 = vadd.s32 %v898, 4294967256
      %v2351 = vperm.slane %v522, %v2350
      %vm2352 = vcmask 392512
      %v2353 = vsel %vm2352, %v2351, %v2349
      %v2354 = vadd.s32 %v898, 4294967248
      %v2355 = vperm.slane %v525, %v2354
      %vm2356 = vcmask 458112
      %v2357 = vsel %vm2356, %v2355, %v2353
      %v2358 = vadd.s32 %v898, 4294967240
      %v2359 = vperm.slane %v528, %v2358
      %vm2360 = vcmask 523712
      %v2361 = vsel %vm2360, %v2359, %v2357
      %v2362 = vadd.s32 %v898, 4294967232
      %v2363 = vperm.slane %v531, %v2362
      %vm2364 = vcmask 589312
      %v2365 = vsel %vm2364, %v2363, %v2361
      %v2366 = vadd.s32 %v898, 4294967224
      %v2367 = vperm.slane %v534, %v2366
      %vm2368 = vcmask 654912
      %v2369 = vsel %vm2368, %v2367, %v2365
      %v2370 = vadd.s32 %v898, 4294967216
      %v2371 = vperm.slane %v537, %v2370
      %vm2372 = vcmask 720512
      %v2373 = vsel %vm2372, %v2371, %v2369
      %v2374 = vadd.s32 %v898, 4294967208
      %v2375 = vperm.slane %v540, %v2374
      %vm2376 = vcmask 786112
      %v2377 = vsel %vm2376, %v2375, %v2373
      %v2378 = vadd.s32 %v898, 4294967200
      %v2379 = vperm.slane %v543, %v2378
      %vm2380 = vcmask 851712
      %v2381 = vsel %vm2380, %v2379, %v2377
      %v2382 = vadd.s32 %v898, 4294967192
      %v2383 = vperm.slane %v546, %v2382
      %vm2384 = vcmask 917312
      %v2385 = vsel %vm2384, %v2383, %v2381
      %v2386 = vadd.s32 %v898, 4294967184
      %v2387 = vperm.slane %v549, %v2386
      %vm2388 = vcmask 982912
      %v2389 = vsel %vm2388, %v2387, %v2385
      %v2390 = vadd.s32 %v898, 4294967176
      %v2391 = vperm.slane %v552, %v2390
      %vm2392 = vcmask 1048512
      %v2393 = vsel %vm2392, %v2391, %v2389
      %v2394 = vperm.slane %v555, %v898
      %v2395 = vperm.slane %v558, %v2334
      %v2396 = vsel %vm2336, %v2395, %v2394
      %v2397 = vperm.slane %v561, %v2338
      %v2398 = vsel %vm2340, %v2397, %v2396
      %v2399 = vperm.slane %v564, %v2342
      %v2400 = vsel %vm2344, %v2399, %v2398
      %v2401 = vperm.slane %v567, %v2346
      %v2402 = vsel %vm2348, %v2401, %v2400
      %v2403 = vperm.slane %v570, %v2350
      %v2404 = vsel %vm2352, %v2403, %v2402
      %v2405 = vperm.slane %v573, %v2354
      %v2406 = vsel %vm2356, %v2405, %v2404
      %v2407 = vperm.slane %v576, %v2358
      %v2408 = vsel %vm2360, %v2407, %v2406
      %v2409 = vperm.slane %v579, %v2362
      %v2410 = vsel %vm2364, %v2409, %v2408
      %v2411 = vperm.slane %v582, %v2366
      %v2412 = vsel %vm2368, %v2411, %v2410
      %v2413 = vperm.slane %v585, %v2370
      %v2414 = vsel %vm2372, %v2413, %v2412
      %v2415 = vperm.slane %v588, %v2374
      %v2416 = vsel %vm2376, %v2415, %v2414
      %v2417 = vperm.slane %v591, %v2378
      %v2418 = vsel %vm2380, %v2417, %v2416
      %v2419 = vperm.slane %v594, %v2382
      %v2420 = vsel %vm2384, %v2419, %v2418
      %v2421 = vperm.slane %v597, %v2386
      %v2422 = vsel %vm2388, %v2421, %v2420
      %v2423 = vperm.slane %v600, %v2390
      %v2424 = vsel %vm2392, %v2423, %v2422
      %v2425 = vperm.slane %v603, %v898
      %v2426 = vperm.slane %v606, %v2334
      %v2427 = vsel %vm2336, %v2426, %v2425
      %v2428 = vperm.slane %v609, %v2338
      %v2429 = vsel %vm2340, %v2428, %v2427
      %v2430 = vperm.slane %v612, %v2342
      %v2431 = vsel %vm2344, %v2430, %v2429
      %v2432 = vperm.slane %v615, %v2346
      %v2433 = vsel %vm2348, %v2432, %v2431
      %v2434 = vperm.slane %v618, %v2350
      %v2435 = vsel %vm2352, %v2434, %v2433
      %v2436 = vperm.slane %v621, %v2354
      %v2437 = vsel %vm2356, %v2436, %v2435
      %v2438 = vperm.slane %v624, %v2358
      %v2439 = vsel %vm2360, %v2438, %v2437
      %v2440 = vperm.slane %v627, %v2362
      %v2441 = vsel %vm2364, %v2440, %v2439
      %v2442 = vperm.slane %v630, %v2366
      %v2443 = vsel %vm2368, %v2442, %v2441
      %v2444 = vperm.slane %v633, %v2370
      %v2445 = vsel %vm2372, %v2444, %v2443
      %v2446 = vperm.slane %v636, %v2374
      %v2447 = vsel %vm2376, %v2446, %v2445
      %v2448 = vperm.slane %v639, %v2378
      %v2449 = vsel %vm2380, %v2448, %v2447
      %v2450 = vperm.slane %v642, %v2382
      %v2451 = vsel %vm2384, %v2450, %v2449
      %v2452 = vperm.slane %v645, %v2386
      %v2453 = vsel %vm2388, %v2452, %v2451
      %v2454 = vperm.slane %v648, %v2390
      %v2455 = vsel %vm2392, %v2454, %v2453
      %v2456 = vperm.slane %v651, %v898
      %v2457 = vperm.slane %v654, %v2334
      %v2458 = vsel %vm2336, %v2457, %v2456
      %v2459 = vperm.slane %v657, %v2338
      %v2460 = vsel %vm2340, %v2459, %v2458
      %v2461 = vperm.slane %v660, %v2342
      %v2462 = vsel %vm2344, %v2461, %v2460
      %v2463 = vperm.slane %v663, %v2346
      %v2464 = vsel %vm2348, %v2463, %v2462
      %v2465 = vperm.slane %v666, %v2350
      %v2466 = vsel %vm2352, %v2465, %v2464
      %v2467 = vperm.slane %v669, %v2354
      %v2468 = vsel %vm2356, %v2467, %v2466
      %v2469 = vperm.slane %v672, %v2358
      %v2470 = vsel %vm2360, %v2469, %v2468
      %v2471 = vperm.slane %v675, %v2362
      %v2472 = vsel %vm2364, %v2471, %v2470
      %v2473 = vperm.slane %v678, %v2366
      %v2474 = vsel %vm2368, %v2473, %v2472
      %v2475 = vperm.slane %v681, %v2370
      %v2476 = vsel %vm2372, %v2475, %v2474
      %v2477 = vperm.slane %v684, %v2374
      %v2478 = vsel %vm2376, %v2477, %v2476
      %v2479 = vperm.slane %v687, %v2378
      %v2480 = vsel %vm2380, %v2479, %v2478
      %v2481 = vperm.slane %v690, %v2382
      %v2482 = vsel %vm2384, %v2481, %v2480
      %v2483 = vperm.slane %v693, %v2386
      %v2484 = vsel %vm2388, %v2483, %v2482
      %v2485 = vperm.slane %v696, %v2390
      %v2486 = vsel %vm2392, %v2485, %v2484
      %v2487 = vperm.slane %v699, %v898
      %v2488 = vperm.slane %v702, %v2334
      %v2489 = vsel %vm2336, %v2488, %v2487
      %v2490 = vperm.slane %v705, %v2338
      %v2491 = vsel %vm2340, %v2490, %v2489
      %v2492 = vperm.slane %v708, %v2342
      %v2493 = vsel %vm2344, %v2492, %v2491
      %v2494 = vperm.slane %v711, %v2346
      %v2495 = vsel %vm2348, %v2494, %v2493
      %v2496 = vperm.slane %v714, %v2350
      %v2497 = vsel %vm2352, %v2496, %v2495
      %v2498 = vperm.slane %v717, %v2354
      %v2499 = vsel %vm2356, %v2498, %v2497
      %v2500 = vperm.slane %v720, %v2358
      %v2501 = vsel %vm2360, %v2500, %v2499
      %v2502 = vperm.slane %v723, %v2362
      %v2503 = vsel %vm2364, %v2502, %v2501
      %v2504 = vperm.slane %v726, %v2366
      %v2505 = vsel %vm2368, %v2504, %v2503
      %v2506 = vperm.slane %v729, %v2370
      %v2507 = vsel %vm2372, %v2506, %v2505
      %v2508 = vperm.slane %v732, %v2374
      %v2509 = vsel %vm2376, %v2508, %v2507
      %v2510 = vperm.slane %v735, %v2378
      %v2511 = vsel %vm2380, %v2510, %v2509
      %v2512 = vperm.slane %v738, %v2382
      %v2513 = vsel %vm2384, %v2512, %v2511
      %v2514 = vperm.slane %v741, %v2386
      %v2515 = vsel %vm2388, %v2514, %v2513
      %v2516 = vperm.slane %v744, %v2390
      %v2517 = vsel %vm2392, %v2516, %v2515
      %v2518 = vperm.slane %v747, %v898
      %v2519 = vperm.slane %v750, %v2334
      %v2520 = vsel %vm2336, %v2519, %v2518
      %v2521 = vperm.slane %v753, %v2338
      %v2522 = vsel %vm2340, %v2521, %v2520
      %v2523 = vperm.slane %v756, %v2342
      %v2524 = vsel %vm2344, %v2523, %v2522
      %v2525 = vperm.slane %v759, %v2346
      %v2526 = vsel %vm2348, %v2525, %v2524
      %v2527 = vperm.slane %v762, %v2350
      %v2528 = vsel %vm2352, %v2527, %v2526
      %v2529 = vperm.slane %v765, %v2354
      %v2530 = vsel %vm2356, %v2529, %v2528
      %v2531 = vperm.slane %v768, %v2358
      %v2532 = vsel %vm2360, %v2531, %v2530
      %v2533 = vperm.slane %v771, %v2362
      %v2534 = vsel %vm2364, %v2533, %v2532
      %v2535 = vperm.slane %v774, %v2366
      %v2536 = vsel %vm2368, %v2535, %v2534
      %v2537 = vperm.slane %v777, %v2370
      %v2538 = vsel %vm2372, %v2537, %v2536
      %v2539 = vperm.slane %v780, %v2374
      %v2540 = vsel %vm2376, %v2539, %v2538
      %v2541 = vperm.slane %v783, %v2378
      %v2542 = vsel %vm2380, %v2541, %v2540
      %v2543 = vperm.slane %v786, %v2382
      %v2544 = vsel %vm2384, %v2543, %v2542
      %v2545 = vperm.slane %v789, %v2386
      %v2546 = vsel %vm2388, %v2545, %v2544
      %v2547 = vperm.slane %v792, %v2390
      %v2548 = vsel %vm2392, %v2547, %v2546
      %v2549 = vperm.slane %v795, %v898
      %v2550 = vperm.slane %v798, %v2334
      %v2551 = vsel %vm2336, %v2550, %v2549
      %v2552 = vperm.slane %v801, %v2338
      %v2553 = vsel %vm2340, %v2552, %v2551
      %v2554 = vperm.slane %v804, %v2342
      %v2555 = vsel %vm2344, %v2554, %v2553
      %v2556 = vperm.slane %v807, %v2346
      %v2557 = vsel %vm2348, %v2556, %v2555
      %v2558 = vperm.slane %v810, %v2350
      %v2559 = vsel %vm2352, %v2558, %v2557
      %v2560 = vperm.slane %v813, %v2354
      %v2561 = vsel %vm2356, %v2560, %v2559
      %v2562 = vperm.slane %v816, %v2358
      %v2563 = vsel %vm2360, %v2562, %v2561
      %v2564 = vperm.slane %v819, %v2362
      %v2565 = vsel %vm2364, %v2564, %v2563
      %v2566 = vperm.slane %v822, %v2366
      %v2567 = vsel %vm2368, %v2566, %v2565
      %v2568 = vperm.slane %v825, %v2370
      %v2569 = vsel %vm2372, %v2568, %v2567
      %v2570 = vperm.slane %v828, %v2374
      %v2571 = vsel %vm2376, %v2570, %v2569
      %v2572 = vperm.slane %v831, %v2378
      %v2573 = vsel %vm2380, %v2572, %v2571
      %v2574 = vperm.slane %v834, %v2382
      %v2575 = vsel %vm2384, %v2574, %v2573
      %v2576 = vperm.slane %v837, %v2386
      %v2577 = vsel %vm2388, %v2576, %v2575
      %v2578 = vperm.slane %v840, %v2390
      %v2579 = vsel %vm2392, %v2578, %v2577
      %v2580 = vperm.slane %v843, %v898
      %v2581 = vperm.slane %v846, %v2334
      %v2582 = vsel %vm2336, %v2581, %v2580
      %v2583 = vperm.slane %v849, %v2338
      %v2584 = vsel %vm2340, %v2583, %v2582
      %v2585 = vperm.slane %v852, %v2342
      %v2586 = vsel %vm2344, %v2585, %v2584
      %v2587 = vperm.slane %v855, %v2346
      %v2588 = vsel %vm2348, %v2587, %v2586
      %v2589 = vperm.slane %v858, %v2350
      %v2590 = vsel %vm2352, %v2589, %v2588
      %v2591 = vperm.slane %v861, %v2354
      %v2592 = vsel %vm2356, %v2591, %v2590
      %v2593 = vperm.slane %v864, %v2358
      %v2594 = vsel %vm2360, %v2593, %v2592
      %v2595 = vperm.slane %v867, %v2362
      %v2596 = vsel %vm2364, %v2595, %v2594
      %v2597 = vperm.slane %v870, %v2366
      %v2598 = vsel %vm2368, %v2597, %v2596
      %v2599 = vperm.slane %v873, %v2370
      %v2600 = vsel %vm2372, %v2599, %v2598
      %v2601 = vperm.slane %v876, %v2374
      %v2602 = vsel %vm2376, %v2601, %v2600
      %v2603 = vperm.slane %v879, %v2378
      %v2604 = vsel %vm2380, %v2603, %v2602
      %v2605 = vperm.slane %v882, %v2382
      %v2606 = vsel %vm2384, %v2605, %v2604
      %v2607 = vperm.slane %v885, %v2386
      %v2608 = vsel %vm2388, %v2607, %v2606
      %v2609 = vperm.slane %v888, %v2390
      %v2610 = vsel %vm2392, %v2609, %v2608
      %vm2611 = vcmask 1042434
      %v2612 = vsel %vm2611, %v2393, %v2393
      %vm2613 = vcmask 1043459
      %v2614 = vsel %vm2613, %v2393, %v2612
      %vm2615 = vcmask 1044484
      %v2616 = vsel %vm2615, %v2393, %v2614
      %vm2617 = vcmask 1045509
      %v2618 = vsel %vm2617, %v2393, %v2616
      %vm2619 = vcmask 1046534
      %v2620 = vsel %vm2619, %v2393, %v2618
      %vm2621 = vcmask 1047559
      %v2622 = vsel %vm2621, %v2393, %v2620
      %v2623 = vsel %vm2611, %v2424, %v2424
      %v2624 = vsel %vm2613, %v2424, %v2623
      %v2625 = vsel %vm2615, %v2424, %v2624
      %v2626 = vsel %vm2617, %v2424, %v2625
      %v2627 = vsel %vm2619, %v2424, %v2626
      %v2628 = vsel %vm2621, %v2424, %v2627
      %v2629 = vsel %vm2611, %v2455, %v2455
      %v2630 = vsel %vm2613, %v2455, %v2629
      %v2631 = vsel %vm2615, %v2455, %v2630
      %v2632 = vsel %vm2617, %v2455, %v2631
      %v2633 = vsel %vm2619, %v2455, %v2632
      %v2634 = vsel %vm2621, %v2455, %v2633
      %v2635 = vsel %vm2611, %v2486, %v2486
      %v2636 = vsel %vm2613, %v2486, %v2635
      %v2637 = vsel %vm2615, %v2486, %v2636
      %v2638 = vsel %vm2617, %v2486, %v2637
      %v2639 = vsel %vm2619, %v2486, %v2638
      %v2640 = vsel %vm2621, %v2486, %v2639
      %v2641 = vsel %vm2611, %v2517, %v2517
      %v2642 = vsel %vm2613, %v2517, %v2641
      %v2643 = vsel %vm2615, %v2517, %v2642
      %v2644 = vsel %vm2617, %v2517, %v2643
      %v2645 = vsel %vm2619, %v2517, %v2644
      %v2646 = vsel %vm2621, %v2517, %v2645
      %v2647 = vsel %vm2611, %v2548, %v2548
      %v2648 = vsel %vm2613, %v2548, %v2647
      %v2649 = vsel %vm2615, %v2548, %v2648
      %v2650 = vsel %vm2617, %v2548, %v2649
      %v2651 = vsel %vm2619, %v2548, %v2650
      %v2652 = vsel %vm2621, %v2548, %v2651
      %v2653 = vsel %vm2611, %v2579, %v2579
      %v2654 = vsel %vm2613, %v2579, %v2653
      %v2655 = vsel %vm2615, %v2579, %v2654
      %v2656 = vsel %vm2617, %v2579, %v2655
      %v2657 = vsel %vm2619, %v2579, %v2656
      %v2658 = vsel %vm2621, %v2579, %v2657
      %v2659 = vsel %vm2611, %v2610, %v2610
      %v2660 = vsel %vm2613, %v2610, %v2659
      %v2661 = vsel %vm2615, %v2610, %v2660
      %v2662 = vsel %vm2617, %v2610, %v2661
      %v2663 = vsel %vm2619, %v2610, %v2662
      %v2664 = vsel %vm2621, %v2610, %v2663
      %v2673 = vmul.f32 %v2181, %v2622
      %v2674 = vmul.f32 %v2182, %v2628
      %v2675 = vmul.f32 %v2183, %v2634
      %v2676 = vmul.f32 %v2184, %v2640
      %v2677 = vmul.f32 %v2185, %v2646
      %v2678 = vmul.f32 %v2186, %v2652
      %v2679 = vmul.f32 %v2187, %v2658
      %v2680 = vmul.f32 %v2188, %v2664
      %v2681 = vmul.f32 %v2189, %v2622
      %v2682 = vmul.f32 %v2190, %v2628
      %v2683 = vmul.f32 %v2191, %v2634
      %v2684 = vmul.f32 %v2192, %v2640
      %v2685 = vmul.f32 %v2193, %v2646
      %v2686 = vmul.f32 %v2194, %v2652
      %v2687 = vmul.f32 %v2195, %v2658
      %v2688 = vmul.f32 %v2196, %v2664
      %v2689 = vmul.f32 %v2197, %v2622
      %v2690 = vmul.f32 %v2198, %v2628
      %v2691 = vmul.f32 %v2199, %v2634
      %v2692 = vmul.f32 %v2200, %v2640
      %v2693 = vmul.f32 %v2201, %v2646
      %v2694 = vmul.f32 %v2202, %v2652
      %v2695 = vmul.f32 %v2203, %v2658
      %v2696 = vmul.f32 %v2204, %v2664
      %v2697 = vadd.f32 %v2673, %v2674
      %v2698 = vadd.f32 %v2697, %v2675
      %v2699 = vadd.f32 %v2698, %v2676
      %v2700 = vadd.f32 %v2699, %v2677
      %v2701 = vadd.f32 %v2700, %v2678
      %v2702 = vadd.f32 %v2701, %v2679
      %v2703 = vadd.f32 %v2702, %v2680
      %2704 = vadd.xlane.f32.xlu0 %v2703
      %v2705 = vpop.xlane.xlu0 %2704
      %v2706 = vadd.f32 %v2681, %v2682
      %v2707 = vadd.f32 %v2706, %v2683
      %v2708 = vadd.f32 %v2707, %v2684
      %v2709 = vadd.f32 %v2708, %v2685
      %v2710 = vadd.f32 %v2709, %v2686
      %v2711 = vadd.f32 %v2710, %v2687
      %v2712 = vadd.f32 %v2711, %v2688
      %2713 = vadd.xlane.f32.xlu0 %v2712
      %v2714 = vpop.xlane.xlu0 %2713
      %v2715 = vadd.f32 %v2689, %v2690
      %v2716 = vadd.f32 %v2715, %v2691
      %v2717 = vadd.f32 %v2716, %v2692
      %v2718 = vadd.f32 %v2717, %v2693
      %v2719 = vadd.f32 %v2718, %v2694
      %v2720 = vadd.f32 %v2719, %v2695
      %v2721 = vadd.f32 %v2720, %v2696
      %2722 = vadd.xlane.f32.xlu0 %v2721
      %v2723 = vpop.xlane.xlu0 %2722
      %v2724 = vadd.f32 %v2178, %v2705
      %v2725 = vadd.f32 %v2179, %v2714
      %v2726 = vadd.f32 %v2180, %v2723
      %vm2727 = vcmask 7168
      %2728 = vst.msk [vmem:[#allocation2] sm:$0xff] %vm2727, %v2724
      %2729 = vst.msk [vmem:[#allocation2 + $0x8] sm:$0xff] %vm2727, %v2725
      %2730 = vst.msk [vmem:[#allocation2 + $0x10] sm:$0xff] %vm2727, %v2726
      %p2731 = scmp.eq.s32.totalorder %s21, 2
      // Predicated region
      $region41: #{baseline_forward.1} parent=35 // pred_check
        %p2732 = pneg %p2731
      $region42: #{baseline_forward.1} parent=35 // pred_check_branch
        %2734 = sbr.rel (%p2732) target = $region44
      $region43: #{baseline_forward.1} parent=35 // pred_region
        %v2735 = vld [vmem:[#allocation2] sm:$0xff]
        %v2736 = vld [vmem:[#allocation2 + $0x8] sm:$0xff]
        %v2737 = vld [vmem:[#allocation2 + $0x10] sm:$0xff]
        %v2738 = vmul.f32 %v2735, 0.0625
        %v2739 = vmul.f32 %v2736, 0.0625
        %v2740 = vmul.f32 %v2737, 0.0625
        %s2741 = sld [smem:[#allocation3]]
        %v2742 = vstv %s2741
        %v2743 = vadd.f32 %v2738, %v2742
        %v2744 = vadd.f32 %v2739, %v2742
        %v2745 = vadd.f32 %v2740, %v2742
        %2747 = vset.pattern.permute.xlu0 0
        %2748 = vperm.xlu0 %2747, %v2743
        %v2749 = vpop.permute.xlu0 %2748
        %2752 = vset.pattern.permute.xlu0 0
        %2753 = vperm.xlu0 %2752, %v2744
        %v2754 = vpop.permute.xlu0 %2753
        %2757 = vset.pattern.permute.xlu0 0
        %2758 = vperm.xlu0 %2757, %v2745
        %v2759 = vpop.permute.xlu0 %2758
        %2761 = vst [vmem:[%s234] sm:$0xff] %v2749
        %2762 = vst [vmem:[%s234 + $0x8] sm:$0xff] %v2754
        %2763 = vst [vmem:[%s234 + $0x10] sm:$0xff] %v2759
      $region44: #{baseline_forward.1} parent=35 // pred_fallthru
        _
      %s2764 = smul.u32 3, %s20
      %p2765 = scmp.lt.s32.totalorder %s2764, 2
      %s2766 = scalar_select %p2765, %s2764, 2
      %s2767 = smul.addr %s2766, 8
      %s2768 = scalar_lea.vmem %s4, %s2767
      // Predicated region
      $region45: #{baseline_forward.1} parent=35 // pred_check
        %p2769 = pneg %p140
      $region46: #{baseline_forward.1} parent=35 // pred_check_branch
        %2771 = sbr.rel (%p2769) target = $region48
      $region47: #{baseline_forward.1} parent=35 // pred_region
        %s2772 = smul.u32 3, %s20
      $region48: #{baseline_forward.1} parent=35 // pred_fallthru
        _
      // Predicated region
      $region49: #{baseline_forward.1} parent=35 // pred_check
        %p2773 = pneg %p140
      $region50: #{baseline_forward.1} parent=35 // pred_check_branch
        %2775 = sbr.rel (%p2773) target = $region52
      $region51: #{baseline_forward.1} parent=35 // pred_region
        %s2776 = smul.u32 3, %s20
        %p2777 = scmp.lt.s32.totalorder %s2776, 2
        %s2778 = scalar_select %p2777, %s2776, 2
        %s2779 = smul.addr %s2778, 8
        %s2780 = scalar_lea.vmem %s4, %s2779
      $region52: #{baseline_forward.1} parent=35 // pred_fallthru
        _
    $region36: #{baseline_forward.1} parent=5 // pred_fallthru
      _
    %p2781 = scmp.le.s32.totalorder 2, %s11
    // Predicated region
    $region53: #{baseline_forward.1} parent=5 // pred_check
      %p2782 = pneg %p2781
    $region54: #{baseline_forward.1} parent=5 // pred_check_branch
      %2784 = sbr.rel (%p2782) target = $region56
    $region55: #{baseline_forward.1} parent=5 // pred_region
      %s2785 = ssub.s32 %s11, 2
    $region56: #{baseline_forward.1} parent=5 // pred_fallthru
      _
  $region6: #{baseline_forward.1} parent=0 // loop_footer
    %s15 = sadd.s32 1, %s11
  $region7: #{baseline_forward.1} parent=0 // loop_footer_branch
    %10 = sbr.rel target = $region3
  $region8: #{baseline_forward.1} parent=0 // loop_exit
    _

</llo_original>
